<compile_context>
chip_gen: v7x
topology: tpu7x:2x2x1
jax: 0.10.0
libtpu: 0.0.40
codegen_flags: <defaults>
</compile_context>

<pallas_src>
import jax
import jax.numpy as jnp
from jax.experimental import pallas as pl
from jax.experimental.pallas import tpu as pltpu

HIDDEN = 768
D1, D2, DOUT = 128, 64, 2
OUT_PAD = 128            # lane-dense padded width of the final layer
BATCH, SEQ = 2, 8
VOCAB = 64
NSEG = 2                 # logical number of segment ids
NSEG_PAD = 8             # sublane-aligned segment-embedding table rows


# ----------------------------- Pallas kernel -------------------------------
def fused_kernel(ids_ref, segs_ref,                       # scalar-prefetch (SMEM)
                 wemb_ref, semb_ref, pemb_ref,            # embedding tables (VMEM)
                 w1_ref, b1_ref, w2_ref, b2_ref, w3_ref, b3_ref,
                 out_ref):
    # --- fused encoder stub + AdaptiveAvgPool2d((1,768)).squeeze(1) ---------
    # pooled[b] = mean_s( word[ids[b,s]] + seg[segs[b,s]] + pos[s] )
    #           = (1/S)*sum_s word[ids[b,s]] + (1/S)*sum_s seg[segs[b,s]]
    #             + mean_s pos[s]
    # TODO(synk): pretrained AutoModel backbone replaced by embedding-only
    #             encoder; attention_mask has no effect on this stub.
    pos_mean = jnp.mean(pemb_ref[...], axis=0, keepdims=True)        # (1, H)
    inv_s = 1.0 / SEQ

    rows = []
    for b in range(BATCH):            # static unroll: BATCH*SEQ = 16 gathers
        acc = jnp.zeros((1, HIDDEN), jnp.float32)
        for s in range(SEQ):
            acc = acc + wemb_ref[pl.ds(ids_ref[b, s], 1), :]
            acc = acc + semb_ref[pl.ds(segs_ref[b, s], 1), :]
        rows.append(acc * inv_s + pos_mean)
    pooled = jnp.concatenate(rows, axis=0)                            # (B, H)

    # TODO(synk): nn.Dropout(0.3) is identity in eval/inference mode -> no-op.

    # --- MLP head: Dense1 -> ReLU -> Dense2 -> ReLU -> out -> Sigmoid -------
    x = jnp.dot(pooled, w1_ref[...], preferred_element_type=jnp.float32)
    x = jnp.maximum(x + b1_ref[...], 0.0)
    x = jnp.dot(x, w2_ref[...], preferred_element_type=jnp.float32)
    x = jnp.maximum(x + b2_ref[...], 0.0)
    x = jnp.dot(x, w3_ref[...], preferred_element_type=jnp.float32)  # (B, OUT_PAD)
    # Padded columns produce sigmoid(0)=0.5 and are sliced away in the wrapper.
    out_ref[...] = jax.nn.sigmoid(x + b3_ref[...])


def quering_head_fused(ids, token_type_ids, params):
    grid_spec = pltpu.PrefetchScalarGridSpec(
        num_scalar_prefetch=2,             # ids, token_type_ids -> SMEM
        grid=(1,),                         # single step; whole problem fits VMEM
        in_specs=[
            pl.BlockSpec((VOCAB, HIDDEN),   lambda i, ids_r, segs_r: (0, 0)),
            pl.BlockSpec((NSEG_PAD, HIDDEN), lambda i, ids_r, segs_r: (0, 0)),
            pl.BlockSpec((SEQ, HIDDEN),     lambda i, ids_r, segs_r: (0, 0)),
            pl.BlockSpec((HIDDEN, D1),      lambda i, ids_r, segs_r: (0, 0)),
            pl.BlockSpec((1, D1),           lambda i, ids_r, segs_r: (0, 0)),
            pl.BlockSpec((D1, D2),          lambda i, ids_r, segs_r: (0, 0)),
            pl.BlockSpec((1, D2),           lambda i, ids_r, segs_r: (0, 0)),
            pl.BlockSpec((D2, OUT_PAD),     lambda i, ids_r, segs_r: (0, 0)),
            pl.BlockSpec((1, OUT_PAD),      lambda i, ids_r, segs_r: (0, 0)),
        ],
        out_specs=pl.BlockSpec((BATCH, OUT_PAD), lambda i, ids_r, segs_r: (0, 0)),
    )
    out_padded = pl.pallas_call(
        fused_kernel,
        out_shape=jax.ShapeDtypeStruct((BATCH, OUT_PAD), jnp.float32),
        grid_spec=grid_spec,
        compiler_params=pltpu.CompilerParams(dimension_semantics=("arbitrary",)),
    )(ids, token_type_ids,
      params["word_emb"], params["seg_emb"], params["pos_emb"],
      params["w1"], params["b1"], params["w2"], params["b2"],
      params["w3_pad"], params["b3_pad"])
    return out_padded[:, :DOUT]


@jax.jit
def quering_model_forward(ids, mask, token_type_ids, params):
    # TODO(synk): attention_mask is unused by the embedding-only encoder stub.
    del mask
    return quering_head_fused(ids, token_type_ids, params)


# ------------------------------- Reference ---------------------------------
def reference_forward(ids, mask, token_type_ids, params):
    del mask
    S = ids.shape[1]
    hidden = (params["word_emb"][ids] + params["seg_emb"][token_type_ids]
              + params["pos_emb"][None, :S, :])
    pooled = jnp.mean(hidden, axis=1)
    x = jax.nn.relu(pooled @ params["w1"] + params["b1"])
    x = jax.nn.relu(x @ params["w2"] + params["b2"])
    x = x @ params["w3"] + params["b3"]
    return jax.nn.sigmoid(x)


# --------------------------------- Params -----------------------------------
def init_params(key):
    ks = jax.random.split(key, 9)

    def linear(kw, kb, fan_in, fan_out):
        # Matches torch.nn.Linear default init: U(-1/sqrt(fan_in), 1/sqrt(fan_in)).
        bound = 1.0 / (fan_in ** 0.5)
        w = jax.random.uniform(kw, (fan_in, fan_out), jnp.float32, -bound, bound)
        b = jax.random.uniform(kb, (1, fan_out), jnp.float32, -bound, bound)
        return w, b

    w1, b1 = linear(ks[0], ks[1], HIDDEN, D1)
    w2, b2 = linear(ks[2], ks[3], D1, D2)
    w3, b3 = linear(ks[4], ks[5], D2, DOUT)

    # Lane-dense padding of the final (64 -> 2) layer to (64 -> 128): avoids
    # masked partial stores and a 98%-masked MXU pass. Padded cols sliced away.
    w3_pad = jnp.zeros((D2, OUT_PAD), jnp.float32).at[:, :DOUT].set(w3)
    b3_pad = jnp.zeros((1, OUT_PAD), jnp.float32).at[:, :DOUT].set(b3)

    return {
        "word_emb": 0.02 * jax.random.normal(ks[6], (VOCAB, HIDDEN), jnp.float32),
        # Segment table stored sublane-aligned (8 rows); only rows < NSEG used.
        "seg_emb": 0.02 * jax.random.normal(ks[7], (NSEG_PAD, HIDDEN), jnp.float32),
        "pos_emb": 0.02 * jax.random.normal(ks[8], (SEQ, HIDDEN), jnp.float32),
        "w1": w1, "b1": b1, "w2": w2, "b2": b2,
        "w3": w3, "b3": b3, "w3_pad": w3_pad, "b3_pad": b3_pad,
    }


# --------------------------------- Main --------------------------------------
if __name__ == "__main__":
    key = jax.random.PRNGKey(0)
    k_ids, k_params = jax.random.split(key)

    ids = jax.random.randint(k_ids, (BATCH, SEQ), 0, VOCAB, dtype=jnp.int32)
    mask = jnp.ones((BATCH, SEQ), dtype=jnp.int32)
    token_type_ids = jnp.zeros((BATCH, SEQ), dtype=jnp.int32)

    params = init_params(k_params)

    out = jax.block_until_ready(
        quering_model_forward(ids, mask, token_type_ids, params))
    ref = jax.block_until_ready(
        reference_forward(ids, mask, token_type_ids, params))

    assert out.shape == (BATCH, DOUT), out.shape
    assert jnp.allclose(out, ref, atol=1e-4, rtol=1e-4), (out, ref)

    print("KERNEL_OK")
</pallas_src>

<mosaic_0001>
module attributes {stable_mosaic.version = 11 : i64} {
  func.func @fused_kernel(%arg0: i32, %arg1: memref<2x8xi32, #tpu.memory_space<smem>>, %arg2: memref<2x8xi32, #tpu.memory_space<smem>>, %arg3: memref<64x768xf32, #tpu.memory_space<vmem>>, %arg4: memref<8x768xf32, #tpu.memory_space<vmem>>, %arg5: memref<8x768xf32, #tpu.memory_space<vmem>>, %arg6: memref<768x128xf32, #tpu.memory_space<vmem>>, %arg7: memref<1x128xf32, #tpu.memory_space<vmem>>, %arg8: memref<128x64xf32, #tpu.memory_space<vmem>>, %arg9: memref<1x64xf32, #tpu.memory_space<vmem>>, %arg10: memref<64x128xf32, #tpu.memory_space<vmem>>, %arg11: memref<1x128xf32, #tpu.memory_space<vmem>>, %arg12: memref<2x128xf32, #tpu.memory_space<vmem>>) attributes {dimension_semantics = [#tpu.dimension_semantics<arbitrary>], iteration_bounds = array<i64: 1>, scalar_prefetch = 2 : i64, scratch_operands = 0 : i64, tpu.core_type = #tpu.core_type<tc>, window_params = [{pipeline_mode = #tpu.pipeline_mode<synchronous>, transform_indices = @transform_0, window_bounds = array<i64: 64, 768>}, {pipeline_mode = #tpu.pipeline_mode<synchronous>, transform_indices = @transform_1, window_bounds = array<i64: 8, 768>}, {pipeline_mode = #tpu.pipeline_mode<synchronous>, transform_indices = @transform_2, window_bounds = array<i64: 8, 768>}, {pipeline_mode = #tpu.pipeline_mode<synchronous>, transform_indices = @transform_3, window_bounds = array<i64: 768, 128>}, {pipeline_mode = #tpu.pipeline_mode<synchronous>, transform_indices = @transform_4, window_bounds = array<i64: 1, 128>}, {pipeline_mode = #tpu.pipeline_mode<synchronous>, transform_indices = @transform_5, window_bounds = array<i64: 128, 64>}, {pipeline_mode = #tpu.pipeline_mode<synchronous>, transform_indices = @transform_6, window_bounds = array<i64: 1, 64>}, {pipeline_mode = #tpu.pipeline_mode<synchronous>, transform_indices = @transform_7, window_bounds = array<i64: 64, 128>}, {pipeline_mode = #tpu.pipeline_mode<synchronous>, transform_indices = @transform_8, window_bounds = array<i64: 1, 128>}, {pipeline_mode = #tpu.pipeline_mode<synchronous>, transform_indices = @transform_9, window_bounds = array<i64: 2, 128>}]} {
    %c0 = arith.constant 0 : index
    %c0_0 = arith.constant 0 : index
    %0 = vector.load %arg5[%c0, %c0_0] : memref<8x768xf32, #tpu.memory_space<vmem>>, vector<8x768xf32>
    %cst = arith.constant dense<0.000000e+00> : vector<768xf32>
    %1 = vector.multi_reduction <add>, %0, %cst [0] : vector<8x768xf32> to vector<768xf32>
    %2 = vector.shape_cast %1 : vector<768xf32> to vector<1x768xf32>
    %cst_1 = arith.constant 8.000000e+00 : f32
    %3 = vector.broadcast %cst_1 : f32 to vector<1x768xf32>
    %4 = arith.divf %2, %3 : vector<1x768xf32>
    %cst_2 = arith.constant 0.000000e+00 : f32
    %5 = vector.broadcast %cst_2 : f32 to vector<1x768xf32>
    %c0_3 = arith.constant 0 : index
    %c0_4 = arith.constant 0 : index
    %6 = memref.load %arg1[%c0_3, %c0_4] : memref<2x8xi32, #tpu.memory_space<smem>>
    %7 = arith.index_cast %6 : i32 to index
    %c0_5 = arith.constant 0 : index
    %8 = vector.load %arg3[%7, %c0_5] : memref<64x768xf32, #tpu.memory_space<vmem>>, vector<1x768xf32>
    %9 = arith.addf %5, %8 : vector<1x768xf32>
    %c0_6 = arith.constant 0 : index
    %c0_7 = arith.constant 0 : index
    %10 = memref.load %arg2[%c0_6, %c0_7] : memref<2x8xi32, #tpu.memory_space<smem>>
    %11 = arith.index_cast %10 : i32 to index
    %c0_8 = arith.constant 0 : index
    %12 = vector.load %arg4[%11, %c0_8] : memref<8x768xf32, #tpu.memory_space<vmem>>, vector<1x768xf32>
    %13 = arith.addf %9, %12 : vector<1x768xf32>
    %c0_9 = arith.constant 0 : index
    %c1 = arith.constant 1 : index
    %14 = memref.load %arg1[%c0_9, %c1] : memref<2x8xi32, #tpu.memory_space<smem>>
    %15 = arith.index_cast %14 : i32 to index
    %c0_10 = arith.constant 0 : index
    %16 = vector.load %arg3[%15, %c0_10] : memref<64x768xf32, #tpu.memory_space<vmem>>, vector<1x768xf32>
    %17 = arith.addf %13, %16 : vector<1x768xf32>
    %c0_11 = arith.constant 0 : index
    %c1_12 = arith.constant 1 : index
    %18 = memref.load %arg2[%c0_11, %c1_12] : memref<2x8xi32, #tpu.memory_space<smem>>
    %19 = arith.index_cast %18 : i32 to index
    %c0_13 = arith.constant 0 : index
    %20 = vector.load %arg4[%19, %c0_13] : memref<8x768xf32, #tpu.memory_space<vmem>>, vector<1x768xf32>
    %21 = arith.addf %17, %20 : vector<1x768xf32>
    %c0_14 = arith.constant 0 : index
    %c2 = arith.constant 2 : index
    %22 = memref.load %arg1[%c0_14, %c2] : memref<2x8xi32, #tpu.memory_space<smem>>
    %23 = arith.index_cast %22 : i32 to index
    %c0_15 = arith.constant 0 : index
    %24 = vector.load %arg3[%23, %c0_15] : memref<64x768xf32, #tpu.memory_space<vmem>>, vector<1x768xf32>
    %25 = arith.addf %21, %24 : vector<1x768xf32>
    %c0_16 = arith.constant 0 : index
    %c2_17 = arith.constant 2 : index
    %26 = memref.load %arg2[%c0_16, %c2_17] : memref<2x8xi32, #tpu.memory_space<smem>>
    %27 = arith.index_cast %26 : i32 to index
    %c0_18 = arith.constant 0 : index
    %28 = vector.load %arg4[%27, %c0_18] : memref<8x768xf32, #tpu.memory_space<vmem>>, vector<1x768xf32>
    %29 = arith.addf %25, %28 : vector<1x768xf32>
    %c0_19 = arith.constant 0 : index
    %c3 = arith.constant 3 : index
    %30 = memref.load %arg1[%c0_19, %c3] : memref<2x8xi32, #tpu.memory_space<smem>>
    %31 = arith.index_cast %30 : i32 to index
    %c0_20 = arith.constant 0 : index
    %32 = vector.load %arg3[%31, %c0_20] : memref<64x768xf32, #tpu.memory_space<vmem>>, vector<1x768xf32>
    %33 = arith.addf %29, %32 : vector<1x768xf32>
    %c0_21 = arith.constant 0 : index
    %c3_22 = arith.constant 3 : index
    %34 = memref.load %arg2[%c0_21, %c3_22] : memref<2x8xi32, #tpu.memory_space<smem>>
    %35 = arith.index_cast %34 : i32 to index
    %c0_23 = arith.constant 0 : index
    %36 = vector.load %arg4[%35, %c0_23] : memref<8x768xf32, #tpu.memory_space<vmem>>, vector<1x768xf32>
    %37 = arith.addf %33, %36 : vector<1x768xf32>
    %c0_24 = arith.constant 0 : index
    %c4 = arith.constant 4 : index
    %38 = memref.load %arg1[%c0_24, %c4] : memref<2x8xi32, #tpu.memory_space<smem>>
    %39 = arith.index_cast %38 : i32 to index
    %c0_25 = arith.constant 0 : index
    %40 = vector.load %arg3[%39, %c0_25] : memref<64x768xf32, #tpu.memory_space<vmem>>, vector<1x768xf32>
    %41 = arith.addf %37, %40 : vector<1x768xf32>
    %c0_26 = arith.constant 0 : index
    %c4_27 = arith.constant 4 : index
    %42 = memref.load %arg2[%c0_26, %c4_27] : memref<2x8xi32, #tpu.memory_space<smem>>
    %43 = arith.index_cast %42 : i32 to index
    %c0_28 = arith.constant 0 : index
    %44 = vector.load %arg4[%43, %c0_28] : memref<8x768xf32, #tpu.memory_space<vmem>>, vector<1x768xf32>
    %45 = arith.addf %41, %44 : vector<1x768xf32>
    %c0_29 = arith.constant 0 : index
    %c5 = arith.constant 5 : index
    %46 = memref.load %arg1[%c0_29, %c5] : memref<2x8xi32, #tpu.memory_space<smem>>
    %47 = arith.index_cast %46 : i32 to index
    %c0_30 = arith.constant 0 : index
    %48 = vector.load %arg3[%47, %c0_30] : memref<64x768xf32, #tpu.memory_space<vmem>>, vector<1x768xf32>
    %49 = arith.addf %45, %48 : vector<1x768xf32>
    %c0_31 = arith.constant 0 : index
    %c5_32 = arith.constant 5 : index
    %50 = memref.load %arg2[%c0_31, %c5_32] : memref<2x8xi32, #tpu.memory_space<smem>>
    %51 = arith.index_cast %50 : i32 to index
    %c0_33 = arith.constant 0 : index
    %52 = vector.load %arg4[%51, %c0_33] : memref<8x768xf32, #tpu.memory_space<vmem>>, vector<1x768xf32>
    %53 = arith.addf %49, %52 : vector<1x768xf32>
    %c0_34 = arith.constant 0 : index
    %c6 = arith.constant 6 : index
    %54 = memref.load %arg1[%c0_34, %c6] : memref<2x8xi32, #tpu.memory_space<smem>>
    %55 = arith.index_cast %54 : i32 to index
    %c0_35 = arith.constant 0 : index
    %56 = vector.load %arg3[%55, %c0_35] : memref<64x768xf32, #tpu.memory_space<vmem>>, vector<1x768xf32>
    %57 = arith.addf %53, %56 : vector<1x768xf32>
    %c0_36 = arith.constant 0 : index
    %c6_37 = arith.constant 6 : index
    %58 = memref.load %arg2[%c0_36, %c6_37] : memref<2x8xi32, #tpu.memory_space<smem>>
    %59 = arith.index_cast %58 : i32 to index
    %c0_38 = arith.constant 0 : index
    %60 = vector.load %arg4[%59, %c0_38] : memref<8x768xf32, #tpu.memory_space<vmem>>, vector<1x768xf32>
    %61 = arith.addf %57, %60 : vector<1x768xf32>
    %c0_39 = arith.constant 0 : index
    %c7 = arith.constant 7 : index
    %62 = memref.load %arg1[%c0_39, %c7] : memref<2x8xi32, #tpu.memory_space<smem>>
    %63 = arith.index_cast %62 : i32 to index
    %c0_40 = arith.constant 0 : index
    %64 = vector.load %arg3[%63, %c0_40] : memref<64x768xf32, #tpu.memory_space<vmem>>, vector<1x768xf32>
    %65 = arith.addf %61, %64 : vector<1x768xf32>
    %c0_41 = arith.constant 0 : index
    %c7_42 = arith.constant 7 : index
    %66 = memref.load %arg2[%c0_41, %c7_42] : memref<2x8xi32, #tpu.memory_space<smem>>
    %67 = arith.index_cast %66 : i32 to index
    %c0_43 = arith.constant 0 : index
    %68 = vector.load %arg4[%67, %c0_43] : memref<8x768xf32, #tpu.memory_space<vmem>>, vector<1x768xf32>
    %69 = arith.addf %65, %68 : vector<1x768xf32>
    %cst_44 = arith.constant 1.250000e-01 : f32
    %70 = vector.broadcast %cst_44 : f32 to vector<1x768xf32>
    %71 = arith.mulf %69, %70 : vector<1x768xf32>
    %72 = arith.addf %71, %4 : vector<1x768xf32>
    %cst_45 = arith.constant 0.000000e+00 : f32
    %73 = vector.broadcast %cst_45 : f32 to vector<1x768xf32>
    %c1_46 = arith.constant 1 : index
    %c0_47 = arith.constant 0 : index
    %74 = memref.load %arg1[%c1_46, %c0_47] : memref<2x8xi32, #tpu.memory_space<smem>>
    %75 = arith.index_cast %74 : i32 to index
    %c0_48 = arith.constant 0 : index
    %76 = vector.load %arg3[%75, %c0_48] : memref<64x768xf32, #tpu.memory_space<vmem>>, vector<1x768xf32>
    %77 = arith.addf %73, %76 : vector<1x768xf32>
    %c1_49 = arith.constant 1 : index
    %c0_50 = arith.constant 0 : index
    %78 = memref.load %arg2[%c1_49, %c0_50] : memref<2x8xi32, #tpu.memory_space<smem>>
    %79 = arith.index_cast %78 : i32 to index
    %c0_51 = arith.constant 0 : index
    %80 = vector.load %arg4[%79, %c0_51] : memref<8x768xf32, #tpu.memory_space<vmem>>, vector<1x768xf32>
    %81 = arith.addf %77, %80 : vector<1x768xf32>
    %c1_52 = arith.constant 1 : index
    %c1_53 = arith.constant 1 : index
    %82 = memref.load %arg1[%c1_52, %c1_53] : memref<2x8xi32, #tpu.memory_space<smem>>
    %83 = arith.index_cast %82 : i32 to index
    %c0_54 = arith.constant 0 : index
    %84 = vector.load %arg3[%83, %c0_54] : memref<64x768xf32, #tpu.memory_space<vmem>>, vector<1x768xf32>
    %85 = arith.addf %81, %84 : vector<1x768xf32>
    %c1_55 = arith.constant 1 : index
    %c1_56 = arith.constant 1 : index
    %86 = memref.load %arg2[%c1_55, %c1_56] : memref<2x8xi32, #tpu.memory_space<smem>>
    %87 = arith.index_cast %86 : i32 to index
    %c0_57 = arith.constant 0 : index
    %88 = vector.load %arg4[%87, %c0_57] : memref<8x768xf32, #tpu.memory_space<vmem>>, vector<1x768xf32>
    %89 = arith.addf %85, %88 : vector<1x768xf32>
    %c1_58 = arith.constant 1 : index
    %c2_59 = arith.constant 2 : index
    %90 = memref.load %arg1[%c1_58, %c2_59] : memref<2x8xi32, #tpu.memory_space<smem>>
    %91 = arith.index_cast %90 : i32 to index
    %c0_60 = arith.constant 0 : index
    %92 = vector.load %arg3[%91, %c0_60] : memref<64x768xf32, #tpu.memory_space<vmem>>, vector<1x768xf32>
    %93 = arith.addf %89, %92 : vector<1x768xf32>
    %c1_61 = arith.constant 1 : index
    %c2_62 = arith.constant 2 : index
    %94 = memref.load %arg2[%c1_61, %c2_62] : memref<2x8xi32, #tpu.memory_space<smem>>
    %95 = arith.index_cast %94 : i32 to index
    %c0_63 = arith.constant 0 : index
    %96 = vector.load %arg4[%95, %c0_63] : memref<8x768xf32, #tpu.memory_space<vmem>>, vector<1x768xf32>
    %97 = arith.addf %93, %96 : vector<1x768xf32>
    %c1_64 = arith.constant 1 : index
    %c3_65 = arith.constant 3 : index
    %98 = memref.load %arg1[%c1_64, %c3_65] : memref<2x8xi32, #tpu.memory_space<smem>>
    %99 = arith.index_cast %98 : i32 to index
    %c0_66 = arith.constant 0 : index
    %100 = vector.load %arg3[%99, %c0_66] : memref<64x768xf32, #tpu.memory_space<vmem>>, vector<1x768xf32>
    %101 = arith.addf %97, %100 : vector<1x768xf32>
    %c1_67 = arith.constant 1 : index
    %c3_68 = arith.constant 3 : index
    %102 = memref.load %arg2[%c1_67, %c3_68] : memref<2x8xi32, #tpu.memory_space<smem>>
    %103 = arith.index_cast %102 : i32 to index
    %c0_69 = arith.constant 0 : index
    %104 = vector.load %arg4[%103, %c0_69] : memref<8x768xf32, #tpu.memory_space<vmem>>, vector<1x768xf32>
    %105 = arith.addf %101, %104 : vector<1x768xf32>
    %c1_70 = arith.constant 1 : index
    %c4_71 = arith.constant 4 : index
    %106 = memref.load %arg1[%c1_70, %c4_71] : memref<2x8xi32, #tpu.memory_space<smem>>
    %107 = arith.index_cast %106 : i32 to index
    %c0_72 = arith.constant 0 : index
    %108 = vector.load %arg3[%107, %c0_72] : memref<64x768xf32, #tpu.memory_space<vmem>>, vector<1x768xf32>
    %109 = arith.addf %105, %108 : vector<1x768xf32>
    %c1_73 = arith.constant 1 : index
    %c4_74 = arith.constant 4 : index
    %110 = memref.load %arg2[%c1_73, %c4_74] : memref<2x8xi32, #tpu.memory_space<smem>>
    %111 = arith.index_cast %110 : i32 to index
    %c0_75 = arith.constant 0 : index
    %112 = vector.load %arg4[%111, %c0_75] : memref<8x768xf32, #tpu.memory_space<vmem>>, vector<1x768xf32>
    %113 = arith.addf %109, %112 : vector<1x768xf32>
    %c1_76 = arith.constant 1 : index
    %c5_77 = arith.constant 5 : index
    %114 = memref.load %arg1[%c1_76, %c5_77] : memref<2x8xi32, #tpu.memory_space<smem>>
    %115 = arith.index_cast %114 : i32 to index
    %c0_78 = arith.constant 0 : index
    %116 = vector.load %arg3[%115, %c0_78] : memref<64x768xf32, #tpu.memory_space<vmem>>, vector<1x768xf32>
    %117 = arith.addf %113, %116 : vector<1x768xf32>
    %c1_79 = arith.constant 1 : index
    %c5_80 = arith.constant 5 : index
    %118 = memref.load %arg2[%c1_79, %c5_80] : memref<2x8xi32, #tpu.memory_space<smem>>
    %119 = arith.index_cast %118 : i32 to index
    %c0_81 = arith.constant 0 : index
    %120 = vector.load %arg4[%119, %c0_81] : memref<8x768xf32, #tpu.memory_space<vmem>>, vector<1x768xf32>
    %121 = arith.addf %117, %120 : vector<1x768xf32>
    %c1_82 = arith.constant 1 : index
    %c6_83 = arith.constant 6 : index
    %122 = memref.load %arg1[%c1_82, %c6_83] : memref<2x8xi32, #tpu.memory_space<smem>>
    %123 = arith.index_cast %122 : i32 to index
    %c0_84 = arith.constant 0 : index
    %124 = vector.load %arg3[%123, %c0_84] : memref<64x768xf32, #tpu.memory_space<vmem>>, vector<1x768xf32>
    %125 = arith.addf %121, %124 : vector<1x768xf32>
    %c1_85 = arith.constant 1 : index
    %c6_86 = arith.constant 6 : index
    %126 = memref.load %arg2[%c1_85, %c6_86] : memref<2x8xi32, #tpu.memory_space<smem>>
    %127 = arith.index_cast %126 : i32 to index
    %c0_87 = arith.constant 0 : index
    %128 = vector.load %arg4[%127, %c0_87] : memref<8x768xf32, #tpu.memory_space<vmem>>, vector<1x768xf32>
    %129 = arith.addf %125, %128 : vector<1x768xf32>
    %c1_88 = arith.constant 1 : index
    %c7_89 = arith.constant 7 : index
    %130 = memref.load %arg1[%c1_88, %c7_89] : memref<2x8xi32, #tpu.memory_space<smem>>
    %131 = arith.index_cast %130 : i32 to index
    %c0_90 = arith.constant 0 : index
    %132 = vector.load %arg3[%131, %c0_90] : memref<64x768xf32, #tpu.memory_space<vmem>>, vector<1x768xf32>
    %133 = arith.addf %129, %132 : vector<1x768xf32>
    %c1_91 = arith.constant 1 : index
    %c7_92 = arith.constant 7 : index
    %134 = memref.load %arg2[%c1_91, %c7_92] : memref<2x8xi32, #tpu.memory_space<smem>>
    %135 = arith.index_cast %134 : i32 to index
    %c0_93 = arith.constant 0 : index
    %136 = vector.load %arg4[%135, %c0_93] : memref<8x768xf32, #tpu.memory_space<vmem>>, vector<1x768xf32>
    %137 = arith.addf %133, %136 : vector<1x768xf32>
    %cst_94 = arith.constant 1.250000e-01 : f32
    %138 = vector.broadcast %cst_94 : f32 to vector<1x768xf32>
    %139 = arith.mulf %137, %138 : vector<1x768xf32>
    %140 = arith.addf %139, %4 : vector<1x768xf32>
    %141 = tpu.concatenate %72, %140 in 0 : vector<1x768xf32>, vector<1x768xf32> -> vector<2x768xf32>
    %c0_95 = arith.constant 0 : index
    %c0_96 = arith.constant 0 : index
    %142 = vector.load %arg6[%c0_95, %c0_96] : memref<768x128xf32, #tpu.memory_space<vmem>>, vector<768x128xf32>
    %cst_97 = arith.constant dense<0.000000e+00> : vector<2x128xf32>
    %143 = tpu.matmul %141, %142, %cst_97 {dimension_numbers = #tpu.dot_dimension_numbers<[1], [0], [0], [1], [0, 0, 1, 1], [], []>} : vector<2x768xf32>, vector<768x128xf32>, vector<2x128xf32> -> vector<2x128xf32>
    %c0_98 = arith.constant 0 : index
    %c0_99 = arith.constant 0 : index
    %144 = vector.load %arg7[%c0_98, %c0_99] : memref<1x128xf32, #tpu.memory_space<vmem>>, vector<1x128xf32>
    %145 = vector.broadcast %144 : vector<1x128xf32> to vector<2x128xf32>
    %146 = arith.addf %143, %145 : vector<2x128xf32>
    %cst_100 = arith.constant 0.000000e+00 : f32
    %147 = vector.broadcast %cst_100 : f32 to vector<2x128xf32>
    %148 = arith.maximumf %146, %147 : vector<2x128xf32>
    %c0_101 = arith.constant 0 : index
    %c0_102 = arith.constant 0 : index
    %149 = vector.load %arg8[%c0_101, %c0_102] : memref<128x64xf32, #tpu.memory_space<vmem>>, vector<128x64xf32>
    %cst_103 = arith.constant dense<0.000000e+00> : vector<2x64xf32>
    %150 = tpu.matmul %148, %149, %cst_103 {dimension_numbers = #tpu.dot_dimension_numbers<[1], [0], [0], [1], [0, 0, 1, 1], [], []>} : vector<2x128xf32>, vector<128x64xf32>, vector<2x64xf32> -> vector<2x64xf32>
    %c0_104 = arith.constant 0 : index
    %c0_105 = arith.constant 0 : index
    %151 = vector.load %arg9[%c0_104, %c0_105] : memref<1x64xf32, #tpu.memory_space<vmem>>, vector<1x64xf32>
    %152 = vector.broadcast %151 : vector<1x64xf32> to vector<2x64xf32>
    %153 = arith.addf %150, %152 : vector<2x64xf32>
    %cst_106 = arith.constant 0.000000e+00 : f32
    %154 = vector.broadcast %cst_106 : f32 to vector<2x64xf32>
    %155 = arith.maximumf %153, %154 : vector<2x64xf32>
    %c0_107 = arith.constant 0 : index
    %c0_108 = arith.constant 0 : index
    %156 = vector.load %arg10[%c0_107, %c0_108] : memref<64x128xf32, #tpu.memory_space<vmem>>, vector<64x128xf32>
    %cst_109 = arith.constant dense<0.000000e+00> : vector<2x128xf32>
    %157 = tpu.matmul %155, %156, %cst_109 {dimension_numbers = #tpu.dot_dimension_numbers<[1], [0], [0], [1], [0, 0, 1, 1], [], []>} : vector<2x64xf32>, vector<64x128xf32>, vector<2x128xf32> -> vector<2x128xf32>
    %c0_110 = arith.constant 0 : index
    %c0_111 = arith.constant 0 : index
    %158 = vector.load %arg11[%c0_110, %c0_111] : memref<1x128xf32, #tpu.memory_space<vmem>>, vector<1x128xf32>
    %159 = vector.broadcast %158 : vector<1x128xf32> to vector<2x128xf32>
    %160 = arith.addf %157, %159 : vector<2x128xf32>
    %161 = arith.negf %160 : vector<2x128xf32>
    %162 = math.exp %161 : vector<2x128xf32>
    %cst_112 = arith.constant 1.000000e+00 : f32
    %163 = vector.broadcast %cst_112 : f32 to vector<2x128xf32>
    %164 = arith.addf %163, %162 : vector<2x128xf32>
    %165 = arith.divf %163, %164 : vector<2x128xf32>
    %c0_113 = arith.constant 0 : index
    %c0_114 = arith.constant 0 : index
    %166 = vector.load %arg12[%c0_113, %c0_114] : memref<2x128xf32, #tpu.memory_space<vmem>>, vector<2x128xf32>
    tpu.vector_store %arg12[%c0_113, %c0_114], %165 {strides = array<i32>} : memref<2x128xf32, #tpu.memory_space<vmem>>, vector<2x128xf32>,
    return
  }
  func.func @transform_0(%arg0: i32, %arg1: memref<2x8xi32, #tpu.memory_space<smem>>, %arg2: memref<2x8xi32, #tpu.memory_space<smem>>) -> (i32, i32) {
    %c0_i32 = arith.constant 0 : i32
    %c0_i32_0 = arith.constant 0 : i32
    %c0_i32_1 = arith.constant 0 : i32
    return %c0_i32, %c0_i32_0 : i32, i32
  }
  func.func @transform_1(%arg0: i32, %arg1: memref<2x8xi32, #tpu.memory_space<smem>>, %arg2: memref<2x8xi32, #tpu.memory_space<smem>>) -> (i32, i32) {
    %c0_i32 = arith.constant 0 : i32
    %c0_i32_0 = arith.constant 0 : i32
    %c0_i32_1 = arith.constant 0 : i32
    return %c0_i32, %c0_i32_0 : i32, i32
  }
  func.func @transform_2(%arg0: i32, %arg1: memref<2x8xi32, #tpu.memory_space<smem>>, %arg2: memref<2x8xi32, #tpu.memory_space<smem>>) -> (i32, i32) {
    %c0_i32 = arith.constant 0 : i32
    %c0_i32_0 = arith.constant 0 : i32
    %c0_i32_1 = arith.constant 0 : i32
    return %c0_i32, %c0_i32_0 : i32, i32
  }
  func.func @transform_3(%arg0: i32, %arg1: memref<2x8xi32, #tpu.memory_space<smem>>, %arg2: memref<2x8xi32, #tpu.memory_space<smem>>) -> (i32, i32) {
    %c0_i32 = arith.constant 0 : i32
    %c0_i32_0 = arith.constant 0 : i32
    %c0_i32_1 = arith.constant 0 : i32
    return %c0_i32, %c0_i32_0 : i32, i32
  }
  func.func @transform_4(%arg0: i32, %arg1: memref<2x8xi32, #tpu.memory_space<smem>>, %arg2: memref<2x8xi32, #tpu.memory_space<smem>>) -> (i32, i32) {
    %c0_i32 = arith.constant 0 : i32
    %c0_i32_0 = arith.constant 0 : i32
    %c0_i32_1 = arith.constant 0 : i32
    return %c0_i32, %c0_i32_0 : i32, i32
  }
  func.func @transform_5(%arg0: i32, %arg1: memref<2x8xi32, #tpu.memory_space<smem>>, %arg2: memref<2x8xi32, #tpu.memory_space<smem>>) -> (i32, i32) {
    %c0_i32 = arith.constant 0 : i32
    %c0_i32_0 = arith.constant 0 : i32
    %c0_i32_1 = arith.constant 0 : i32
    return %c0_i32, %c0_i32_0 : i32, i32
  }
  func.func @transform_6(%arg0: i32, %arg1: memref<2x8xi32, #tpu.memory_space<smem>>, %arg2: memref<2x8xi32, #tpu.memory_space<smem>>) -> (i32, i32) {
    %c0_i32 = arith.constant 0 : i32
    %c0_i32_0 = arith.constant 0 : i32
    %c0_i32_1 = arith.constant 0 : i32
    return %c0_i32, %c0_i32_0 : i32, i32
  }
  func.func @transform_7(%arg0: i32, %arg1: memref<2x8xi32, #tpu.memory_space<smem>>, %arg2: memref<2x8xi32, #tpu.memory_space<smem>>) -> (i32, i32) {
    %c0_i32 = arith.constant 0 : i32
    %c0_i32_0 = arith.constant 0 : i32
    %c0_i32_1 = arith.constant 0 : i32
    return %c0_i32, %c0_i32_0 : i32, i32
  }
  func.func @transform_8(%arg0: i32, %arg1: memref<2x8xi32, #tpu.memory_space<smem>>, %arg2: memref<2x8xi32, #tpu.memory_space<smem>>) -> (i32, i32) {
    %c0_i32 = arith.constant 0 : i32
    %c0_i32_0 = arith.constant 0 : i32
    %c0_i32_1 = arith.constant 0 : i32
    return %c0_i32, %c0_i32_0 : i32, i32
  }
  func.func @transform_9(%arg0: i32, %arg1: memref<2x8xi32, #tpu.memory_space<smem>>, %arg2: memref<2x8xi32, #tpu.memory_space<smem>>) -> (i32, i32) {
    %c0_i32 = arith.constant 0 : i32
    %c0_i32_0 = arith.constant 0 : i32
    %c0_i32_1 = arith.constant 0 : i32
    return %c0_i32, %c0_i32_0 : i32, i32
  }
}

</mosaic_0001>

<llo_original>
// kernel: quering_model_forward.1
$region0: #{quering_model_forward.1}
  #allocation0 [shape = 'u32[]', space=smem, size = 0x4, offset = 0x4, fixed_abs, tag = 'smem constant byte address 0x4 - core index']
  #allocation1 [shape = 'u32[144,128]{1,0:T(1,128)}', space=vmem, size = 0x12000, scoped, tag = 'internal scratch']
  #allocation2 [shape = 's32[1]{0}', space=sflag, size = 0x4, scoped, tag = 'scoped memory for quering_model_forward.1']
  #allocation3 [shape = 'u8[1024]{0}', space=smem, size = 0x400, scoped, tag = 'prefetched SMEM operand 0']
  #allocation4 [shape = 'u8[1024]{0}', space=smem, size = 0x400, scoped, tag = 'prefetched SMEM operand 1']
  %s0 = inlined_call_operand.vmem [shape: s32[2,8], index: 0, kind: input, shape index: {}]
  %s1 = inlined_call_operand.vmem [shape: s32[2,8], index: 1, kind: input, shape index: {}]
  %s2 = inlined_call_operand.hbm [shape: f32[64,768], index: 2, kind: input, shape index: {}]
  %s3 = inlined_call_operand.vmem [shape: f32[8,768], index: 3, kind: input, shape index: {}]
  %s4 = inlined_call_operand.vmem [shape: f32[8,768], index: 4, kind: input, shape index: {}]
  %s5 = inlined_call_operand.hbm [shape: f32[768,128], index: 5, kind: input, shape index: {}]
  %s6 = inlined_call_operand.vmem [shape: f32[1,128], index: 6, kind: input, shape index: {}]
  %s7 = inlined_call_operand.vmem [shape: f32[128,64], index: 7, kind: input, shape index: {}]
  %s8 = inlined_call_operand.vmem [shape: f32[1,64], index: 8, kind: input, shape index: {}]
  %s9 = inlined_call_operand.vmem [shape: f32[64,128], index: 9, kind: input, shape index: {}]
  %s10 = inlined_call_operand.vmem [shape: f32[1,128], index: 10, kind: input, shape index: {}]
  %s11 = inlined_call_operand.hbm [shape: f32[2,128], index: 11, kind: output, shape index: {}]
  %s12 = sld [smem:[#allocation0]]
  $region54: #{quering_model_forward.1} parent=0
    _
  %s14 = ssub.s32 1, %s12
  %s15 = scalar_select 0, %s14, %s12
  %s16 = sshll.u32 %s0, 4
  %s17 = int_to_ptr.vmem [resolvable:$true] %s16
  %19 = dma.vmem_to_smem %s17, 32, [#allocation3], [#allocation2]
  %s20 = sshll.u32 %s1, 4
  %s21 = int_to_ptr.vmem [resolvable:$true] %s20
  %23 = dma.vmem_to_smem %s21, 32, [#allocation4], [#allocation2]
  %24 = dma.done [#allocation2], 64
  %25 = sfence
  $region1: #{quering_model_forward.1} parent=0
    #allocation5 [shape = 'u8[196608]{0}', space=vmem, size = 0x30000, scoped, tag = 'input window, operand 2, single buffered']
    #allocation6 [shape = 's32[1]{0}', space=sflag, size = 0x4, scoped, tag = 'scoped memory for quering_model_forward.1']
    #allocation7 [shape = 's32[1]{0}', space=sflag, size = 0x4, scoped, tag = 'scoped memory for quering_model_forward.1']
    #allocation8 [shape = 'u8[393216]{0}', space=vmem, size = 0x60000, scoped, tag = 'input window, operand 5, single buffered']
    #allocation9 [shape = 's32[1]{0}', space=sflag, size = 0x4, scoped, tag = 'scoped memory for quering_model_forward.1']
    #allocation10 [shape = 'u8[1024]{0}', space=vmem, size = 0x400, scoped, tag = 'output window, operand 0, single buffered']
    %26 = vsyncpa [#allocation6], 0
    %27 = vsyncpa [#allocation9], 0
    %28 = vsyncpa [#allocation7], 0
    // Predicated region
    $region2: #{quering_model_forward.1} parent=1 // pred_check
      _
    $region3: #{quering_model_forward.1} parent=1 // pred_check_branch
      %30 = sbr.rel (0) target = $region5
    $region4: #{quering_model_forward.1} parent=1 // pred_region
      %s32 = ssub.s32 6144, 6144
      %33 = vsyncadd [#allocation6], %s32
      %s34 = sshll.u32 [#allocation5], 4
      %s35 = int_to_ptr.vmem [resolvable:$true] %s34
      %40 = dma.hbm_to_vmem [thread:$0]  %s2, 6144, %s35, [#allocation6], 768, 768, 48
    $region5: #{quering_model_forward.1} parent=1 // pred_fallthru
      _
    // Predicated region
    $region6: #{quering_model_forward.1} parent=1 // pred_check
      _
    $region7: #{quering_model_forward.1} parent=1 // pred_check_branch
      %42 = sbr.rel (0) target = $region9
    $region8: #{quering_model_forward.1} parent=1 // pred_region
      _
    $region9: #{quering_model_forward.1} parent=1 // pred_fallthru
      _
    // Predicated region
    $region10: #{quering_model_forward.1} parent=1 // pred_check
      _
    $region11: #{quering_model_forward.1} parent=1 // pred_check_branch
      %44 = sbr.rel (0) target = $region13
    $region12: #{quering_model_forward.1} parent=1 // pred_region
      _
    $region13: #{quering_model_forward.1} parent=1 // pred_fallthru
      _
    // Predicated region
    $region14: #{quering_model_forward.1} parent=1 // pred_check
      _
    $region15: #{quering_model_forward.1} parent=1 // pred_check_branch
      %46 = sbr.rel (0) target = $region17
    $region16: #{quering_model_forward.1} parent=1 // pred_region
      %s48 = ssub.s32 12288, 12288
      %49 = vsyncadd [#allocation9], %s48
      %s50 = sshll.u32 [#allocation8], 4
      %s51 = int_to_ptr.vmem [resolvable:$true] %s50
      %56 = dma.hbm_to_vmem [thread:$0]  %s5, 12288, %s51, [#allocation9], 128, 128, 8
    $region17: #{quering_model_forward.1} parent=1 // pred_fallthru
      _
    // Predicated region
    $region18: #{quering_model_forward.1} parent=1 // pred_check
      _
    $region19: #{quering_model_forward.1} parent=1 // pred_check_branch
      %58 = sbr.rel (0) target = $region21
    $region20: #{quering_model_forward.1} parent=1 // pred_region
      _
    $region21: #{quering_model_forward.1} parent=1 // pred_fallthru
      _
    // Predicated region
    $region22: #{quering_model_forward.1} parent=1 // pred_check
      _
    $region23: #{quering_model_forward.1} parent=1 // pred_check_branch
      %60 = sbr.rel (0) target = $region25
    $region24: #{quering_model_forward.1} parent=1 // pred_region
      _
    $region25: #{quering_model_forward.1} parent=1 // pred_fallthru
      _
    // Predicated region
    $region26: #{quering_model_forward.1} parent=1 // pred_check
      _
    $region27: #{quering_model_forward.1} parent=1 // pred_check_branch
      %62 = sbr.rel (0) target = $region29
    $region28: #{quering_model_forward.1} parent=1 // pred_region
      _
    $region29: #{quering_model_forward.1} parent=1 // pred_fallthru
      _
    // Predicated region
    $region30: #{quering_model_forward.1} parent=1 // pred_check
      _
    $region31: #{quering_model_forward.1} parent=1 // pred_check_branch
      %64 = sbr.rel (0) target = $region33
    $region32: #{quering_model_forward.1} parent=1 // pred_region
      _
    $region33: #{quering_model_forward.1} parent=1 // pred_fallthru
      _
    // Predicated region
    $region34: #{quering_model_forward.1} parent=1 // pred_check
      _
    $region35: #{quering_model_forward.1} parent=1 // pred_check_branch
      %66 = sbr.rel (0) target = $region37
    $region36: #{quering_model_forward.1} parent=1 // pred_region
      _
    $region37: #{quering_model_forward.1} parent=1 // pred_fallthru
      _
    // Predicated region
    $region38: #{quering_model_forward.1} parent=1 // pred_check
      _
    $region39: #{quering_model_forward.1} parent=1 // pred_check_branch
      %68 = sbr.rel (0) target = $region41
    $region40: #{quering_model_forward.1} parent=1 // pred_region
      %69 = dma.done [#allocation6], 6144
    $region41: #{quering_model_forward.1} parent=1 // pred_fallthru
      _
    // Predicated region
    $region42: #{quering_model_forward.1} parent=1 // pred_check
      _
    $region43: #{quering_model_forward.1} parent=1 // pred_check_branch
      %71 = sbr.rel (0) target = $region45
    $region44: #{quering_model_forward.1} parent=1 // pred_region
      %72 = dma.done [#allocation9], 12288
    $region45: #{quering_model_forward.1} parent=1 // pred_fallthru
      _
    %v73 = vld [vmem:[%s4] sm:$0xff]
    %v74 = vld [vmem:[%s4 + $0x8] sm:$0xff]
    %v75 = vld [vmem:[%s4 + $0x10] sm:$0xff]
    %v76 = vld [vmem:[%s4 + $0x18] sm:$0xff]
    %v77 = vld [vmem:[%s4 + $0x20] sm:$0xff]
    %v78 = vld [vmem:[%s4 + $0x28] sm:$0xff]
    %v79 = vrot.slane %v73, 4
    %v80 = vadd.f32 %v73, %v79
    %v81 = vrot.slane %v80, 2
    %v82 = vadd.f32 %v80, %v81
    %v83 = vrot.slane %v82, 1
    %v84 = vadd.f32 %v82, %v83
    %v85 = vrot.slane %v74, 4
    %v86 = vadd.f32 %v74, %v85
    %v87 = vrot.slane %v86, 2
    %v88 = vadd.f32 %v86, %v87
    %v89 = vrot.slane %v88, 1
    %v90 = vadd.f32 %v88, %v89
    %v91 = vrot.slane %v75, 4
    %v92 = vadd.f32 %v75, %v91
    %v93 = vrot.slane %v92, 2
    %v94 = vadd.f32 %v92, %v93
    %v95 = vrot.slane %v94, 1
    %v96 = vadd.f32 %v94, %v95
    %v97 = vrot.slane %v76, 4
    %v98 = vadd.f32 %v76, %v97
    %v99 = vrot.slane %v98, 2
    %v100 = vadd.f32 %v98, %v99
    %v101 = vrot.slane %v100, 1
    %v102 = vadd.f32 %v100, %v101
    %v103 = vrot.slane %v77, 4
    %v104 = vadd.f32 %v77, %v103
    %v105 = vrot.slane %v104, 2
    %v106 = vadd.f32 %v104, %v105
    %v107 = vrot.slane %v106, 1
    %v108 = vadd.f32 %v106, %v107
    %v109 = vrot.slane %v78, 4
    %v110 = vadd.f32 %v78, %v109
    %v111 = vrot.slane %v110, 2
    %v112 = vadd.f32 %v110, %v111
    %v113 = vrot.slane %v112, 1
    %v114 = vadd.f32 %v112, %v113
    %v115 = vrcp.pop 8.0
    %v116 = vmul.f32 %v84, %v115
    %v117 = vmul.f32 %v90, %v115
    %v118 = vmul.f32 %v96, %v115
    %v119 = vmul.f32 %v102, %v115
    %v120 = vmul.f32 %v108, %v115
    %v121 = vmul.f32 %v114, %v115
    %s122 = sld [smem:[#allocation3]]
    %s123 = sshra.s32 %s122, 3
    %s124 = sand.u32 %s122, 7
    %s125 = sshra.s32 %s122, 3
    %s126 = sand.u32 %s122, 7
    %s127 = smul.u32 %s123, 6
    %s128 = smul.u32 %s127, 8
    %s129 = sadd.s32 %s128, %s126
    %s130 = scalar_lea.vmem [#allocation5], %s129
    %v131 = vld [vmem:[%s130] ss:$8 sm:$0xf]
    %v132 = vld [vmem:[%s130] ss:$8 sm:$0x30]
    %v133 = vor.u32 %v131, %v132
    %v134 = vadd.f32 %v133, 0.0
    %s135 = sld [smem:[#allocation4]]
    %s136 = sshra.s32 %s135, 3
    %s137 = sand.u32 %s135, 7
    %s138 = sshra.s32 %s135, 3
    %s139 = sand.u32 %s135, 7
    %s140 = smul.u32 %s136, 6
    %s141 = smul.u32 %s140, 8
    %s142 = sadd.s32 %s141, %s139
    %s143 = scalar_lea.vmem %s3, %s142
    %v144 = vld [vmem:[%s143] ss:$8 sm:$0xf]
    %v145 = vld [vmem:[%s143] ss:$8 sm:$0x30]
    %v146 = vor.u32 %v144, %v145
    %v147 = vadd.f32 %v134, %v146
    %s148 = sld [smem:[#allocation3 + $0x1]]
    %s149 = sshra.s32 %s148, 3
    %s150 = sand.u32 %s148, 7
    %s151 = sshra.s32 %s148, 3
    %s152 = sand.u32 %s148, 7
    %s153 = smul.u32 %s149, 6
    %s154 = smul.u32 %s153, 8
    %s155 = sadd.s32 %s154, %s152
    %s156 = scalar_lea.vmem [#allocation5], %s155
    %v157 = vld [vmem:[%s156] ss:$8 sm:$0xf]
    %v158 = vld [vmem:[%s156] ss:$8 sm:$0x30]
    %v159 = vor.u32 %v157, %v158
    %v160 = vadd.f32 %v147, %v159
    %s161 = sld [smem:[#allocation4 + $0x1]]
    %s162 = sshra.s32 %s161, 3
    %s163 = sand.u32 %s161, 7
    %s164 = sshra.s32 %s161, 3
    %s165 = sand.u32 %s161, 7
    %s166 = smul.u32 %s162, 6
    %s167 = smul.u32 %s166, 8
    %s168 = sadd.s32 %s167, %s165
    %s169 = scalar_lea.vmem %s3, %s168
    %v170 = vld [vmem:[%s169] ss:$8 sm:$0xf]
    %v171 = vld [vmem:[%s169] ss:$8 sm:$0x30]
    %v172 = vor.u32 %v170, %v171
    %v173 = vadd.f32 %v160, %v172
    %s174 = sld [smem:[#allocation3 + $0x2]]
    %s175 = sshra.s32 %s174, 3
    %s176 = sand.u32 %s174, 7
    %s177 = sshra.s32 %s174, 3
    %s178 = sand.u32 %s174, 7
    %s179 = smul.u32 %s175, 6
    %s180 = smul.u32 %s179, 8
    %s181 = sadd.s32 %s180, %s178
    %s182 = scalar_lea.vmem [#allocation5], %s181
    %v183 = vld [vmem:[%s182] ss:$8 sm:$0xf]
    %v184 = vld [vmem:[%s182] ss:$8 sm:$0x30]
    %v185 = vor.u32 %v183, %v184
    %v186 = vadd.f32 %v173, %v185
    %s187 = sld [smem:[#allocation4 + $0x2]]
    %s188 = sshra.s32 %s187, 3
    %s189 = sand.u32 %s187, 7
    %s190 = sshra.s32 %s187, 3
    %s191 = sand.u32 %s187, 7
    %s192 = smul.u32 %s188, 6
    %s193 = smul.u32 %s192, 8
    %s194 = sadd.s32 %s193, %s191
    %s195 = scalar_lea.vmem %s3, %s194
    %v196 = vld [vmem:[%s195] ss:$8 sm:$0xf]
    %v197 = vld [vmem:[%s195] ss:$8 sm:$0x30]
    %v198 = vor.u32 %v196, %v197
    %v199 = vadd.f32 %v186, %v198
    %s200 = sld [smem:[#allocation3 + $0x3]]
    %s201 = sshra.s32 %s200, 3
    %s202 = sand.u32 %s200, 7
    %s203 = sshra.s32 %s200, 3
    %s204 = sand.u32 %s200, 7
    %s205 = smul.u32 %s201, 6
    %s206 = smul.u32 %s205, 8
    %s207 = sadd.s32 %s206, %s204
    %s208 = scalar_lea.vmem [#allocation5], %s207
    %v209 = vld [vmem:[%s208] ss:$8 sm:$0xf]
    %v210 = vld [vmem:[%s208] ss:$8 sm:$0x30]
    %v211 = vor.u32 %v209, %v210
    %v212 = vadd.f32 %v199, %v211
    %s213 = sld [smem:[#allocation4 + $0x3]]
    %s214 = sshra.s32 %s213, 3
    %s215 = sand.u32 %s213, 7
    %s216 = sshra.s32 %s213, 3
    %s217 = sand.u32 %s213, 7
    %s218 = smul.u32 %s214, 6
    %s219 = smul.u32 %s218, 8
    %s220 = sadd.s32 %s219, %s217
    %s221 = scalar_lea.vmem %s3, %s220
    %v222 = vld [vmem:[%s221] ss:$8 sm:$0xf]
    %v223 = vld [vmem:[%s221] ss:$8 sm:$0x30]
    %v224 = vor.u32 %v222, %v223
    %v225 = vadd.f32 %v212, %v224
    %s226 = sld [smem:[#allocation3 + $0x4]]
    %s227 = sshra.s32 %s226, 3
    %s228 = sand.u32 %s226, 7
    %s229 = sshra.s32 %s226, 3
    %s230 = sand.u32 %s226, 7
    %s231 = smul.u32 %s227, 6
    %s232 = smul.u32 %s231, 8
    %s233 = sadd.s32 %s232, %s230
    %s234 = scalar_lea.vmem [#allocation5], %s233
    %v235 = vld [vmem:[%s234] ss:$8 sm:$0xf]
    %v236 = vld [vmem:[%s234] ss:$8 sm:$0x30]
    %v237 = vor.u32 %v235, %v236
    %v238 = vadd.f32 %v225, %v237
    %s239 = sld [smem:[#allocation4 + $0x4]]
    %s240 = sshra.s32 %s239, 3
    %s241 = sand.u32 %s239, 7
    %s242 = sshra.s32 %s239, 3
    %s243 = sand.u32 %s239, 7
    %s244 = smul.u32 %s240, 6
    %s245 = smul.u32 %s244, 8
    %s246 = sadd.s32 %s245, %s243
    %s247 = scalar_lea.vmem %s3, %s246
    %v248 = vld [vmem:[%s247] ss:$8 sm:$0xf]
    %v249 = vld [vmem:[%s247] ss:$8 sm:$0x30]
    %v250 = vor.u32 %v248, %v249
    %v251 = vadd.f32 %v238, %v250
    %s252 = sld [smem:[#allocation3 + $0x5]]
    %s253 = sshra.s32 %s252, 3
    %s254 = sand.u32 %s252, 7
    %s255 = sshra.s32 %s252, 3
    %s256 = sand.u32 %s252, 7
    %s257 = smul.u32 %s253, 6
    %s258 = smul.u32 %s257, 8
    %s259 = sadd.s32 %s258, %s256
    %s260 = scalar_lea.vmem [#allocation5], %s259
    %v261 = vld [vmem:[%s260] ss:$8 sm:$0xf]
    %v262 = vld [vmem:[%s260] ss:$8 sm:$0x30]
    %v263 = vor.u32 %v261, %v262
    %v264 = vadd.f32 %v251, %v263
    %s265 = sld [smem:[#allocation4 + $0x5]]
    %s266 = sshra.s32 %s265, 3
    %s267 = sand.u32 %s265, 7
    %s268 = sshra.s32 %s265, 3
    %s269 = sand.u32 %s265, 7
    %s270 = smul.u32 %s266, 6
    %s271 = smul.u32 %s270, 8
    %s272 = sadd.s32 %s271, %s269
    %s273 = scalar_lea.vmem %s3, %s272
    %v274 = vld [vmem:[%s273] ss:$8 sm:$0xf]
    %v275 = vld [vmem:[%s273] ss:$8 sm:$0x30]
    %v276 = vor.u32 %v274, %v275
    %v277 = vadd.f32 %v264, %v276
    %s278 = sld [smem:[#allocation3 + $0x6]]
    %s279 = sshra.s32 %s278, 3
    %s280 = sand.u32 %s278, 7
    %s281 = sshra.s32 %s278, 3
    %s282 = sand.u32 %s278, 7
    %s283 = smul.u32 %s279, 6
    %s284 = smul.u32 %s283, 8
    %s285 = sadd.s32 %s284, %s282
    %s286 = scalar_lea.vmem [#allocation5], %s285
    %v287 = vld [vmem:[%s286] ss:$8 sm:$0xf]
    %v288 = vld [vmem:[%s286] ss:$8 sm:$0x30]
    %v289 = vor.u32 %v287, %v288
    %v290 = vadd.f32 %v277, %v289
    %s291 = sld [smem:[#allocation4 + $0x6]]
    %s292 = sshra.s32 %s291, 3
    %s293 = sand.u32 %s291, 7
    %s294 = sshra.s32 %s291, 3
    %s295 = sand.u32 %s291, 7
    %s296 = smul.u32 %s292, 6
    %s297 = smul.u32 %s296, 8
    %s298 = sadd.s32 %s297, %s295
    %s299 = scalar_lea.vmem %s3, %s298
    %v300 = vld [vmem:[%s299] ss:$8 sm:$0xf]
    %v301 = vld [vmem:[%s299] ss:$8 sm:$0x30]
    %v302 = vor.u32 %v300, %v301
    %v303 = vadd.f32 %v290, %v302
    %s304 = sld [smem:[#allocation3 + $0x7]]
    %s305 = sshra.s32 %s304, 3
    %s306 = sand.u32 %s304, 7
    %s307 = sshra.s32 %s304, 3
    %s308 = sand.u32 %s304, 7
    %s309 = smul.u32 %s305, 6
    %s310 = smul.u32 %s309, 8
    %s311 = sadd.s32 %s310, %s308
    %s312 = scalar_lea.vmem [#allocation5], %s311
    %v313 = vld [vmem:[%s312] ss:$8 sm:$0xf]
    %v314 = vld [vmem:[%s312] ss:$8 sm:$0x30]
    %v315 = vor.u32 %v313, %v314
    %v316 = vadd.f32 %v303, %v315
    %s317 = sld [smem:[#allocation4 + $0x7]]
    %s318 = sshra.s32 %s317, 3
    %s319 = sand.u32 %s317, 7
    %s320 = sshra.s32 %s317, 3
    %s321 = sand.u32 %s317, 7
    %s322 = smul.u32 %s318, 6
    %s323 = smul.u32 %s322, 8
    %s324 = sadd.s32 %s323, %s321
    %s325 = scalar_lea.vmem %s3, %s324
    %v326 = vld [vmem:[%s325] ss:$8 sm:$0xf]
    %v327 = vld [vmem:[%s325] ss:$8 sm:$0x30]
    %v328 = vor.u32 %v326, %v327
    %v329 = vadd.f32 %v316, %v328
    %v330 = vmul.f32 %v329, 0.125
    %v337 = vcombine.low %v116, %v117
    %v338 = vcombine.low %v118, %v119
    %v339 = vcombine.low %v120, %v121
    %v341 = vunpack.c.l.s4 1966171168
    %v342 = vunpack.c.0.s8 %v341
    %v343 = vlaneseq
    %v344 = vshrl.u32 %v343, 7
    %v345 = vsub.s32 %v342, %v344
    %v346 = vrot.slane %v337, %v345
    %v348 = vunpack.c.l.s4 1966171168
    %v349 = vunpack.c.0.s8 %v348
    %v350 = vlaneseq
    %v351 = vshrl.u32 %v350, 7
    %v352 = vsub.s32 %v349, %v351
    %v353 = vrot.slane %v338, %v352
    %v355 = vunpack.c.l.s4 1966171168
    %v356 = vunpack.c.0.s8 %v355
    %v357 = vlaneseq
    %v358 = vshrl.u32 %v357, 7
    %v359 = vsub.s32 %v356, %v358
    %v360 = vrot.slane %v339, %v359
    %v361 = vcombine.low %v346, %v353
    %v363 = vunpack.c.l.s4 1966171168
    %v364 = vunpack.c.0.s8 %v363
    %v365 = vlaneseq
    %v366 = vshrl.u32 %v365, 7
    %v367 = vsub.s32 %v364, %v366
    %v368 = vrot.slane %v361, %v367
    %v370 = vunpack.c.l.s4 1966171168
    %v371 = vunpack.c.0.s8 %v370
    %v372 = vlaneseq
    %v373 = vshrl.u32 %v372, 7
    %v374 = vsub.s32 %v371, %v373
    %v375 = vrot.slane %v360, %v374
    %v376 = vcombine.low %v368, %v375
    %v378 = vadd.f32 %v330, %v376
    %s379 = sld [smem:[#allocation3 + $0x80]]
    %s380 = sshra.s32 %s379, 3
    %s381 = sand.u32 %s379, 7
    %s382 = sshra.s32 %s379, 3
    %s383 = sand.u32 %s379, 7
    %s384 = smul.u32 %s380, 6
    %s385 = smul.u32 %s384, 8
    %s386 = sadd.s32 %s385, %s383
    %s387 = scalar_lea.vmem [#allocation5], %s386
    %v388 = vld [vmem:[%s387] ss:$8 sm:$0xf]
    %v389 = vld [vmem:[%s387] ss:$8 sm:$0x30]
    %v390 = vor.u32 %v388, %v389
    %v391 = vadd.f32 %v390, 0.0
    %s392 = sld [smem:[#allocation4 + $0x80]]
    %s393 = sshra.s32 %s392, 3
    %s394 = sand.u32 %s392, 7
    %s395 = sshra.s32 %s392, 3
    %s396 = sand.u32 %s392, 7
    %s397 = smul.u32 %s393, 6
    %s398 = smul.u32 %s397, 8
    %s399 = sadd.s32 %s398, %s396
    %s400 = scalar_lea.vmem %s3, %s399
    %v401 = vld [vmem:[%s400] ss:$8 sm:$0xf]
    %v402 = vld [vmem:[%s400] ss:$8 sm:$0x30]
    %v403 = vor.u32 %v401, %v402
    %v404 = vadd.f32 %v391, %v403
    %s405 = sld [smem:[#allocation3 + $0x81]]
    %s406 = sshra.s32 %s405, 3
    %s407 = sand.u32 %s405, 7
    %s408 = sshra.s32 %s405, 3
    %s409 = sand.u32 %s405, 7
    %s410 = smul.u32 %s406, 6
    %s411 = smul.u32 %s410, 8
    %s412 = sadd.s32 %s411, %s409
    %s413 = scalar_lea.vmem [#allocation5], %s412
    %v414 = vld [vmem:[%s413] ss:$8 sm:$0xf]
    %v415 = vld [vmem:[%s413] ss:$8 sm:$0x30]
    %v416 = vor.u32 %v414, %v415
    %v417 = vadd.f32 %v404, %v416
    %s418 = sld [smem:[#allocation4 + $0x81]]
    %s419 = sshra.s32 %s418, 3
    %s420 = sand.u32 %s418, 7
    %s421 = sshra.s32 %s418, 3
    %s422 = sand.u32 %s418, 7
    %s423 = smul.u32 %s419, 6
    %s424 = smul.u32 %s423, 8
    %s425 = sadd.s32 %s424, %s422
    %s426 = scalar_lea.vmem %s3, %s425
    %v427 = vld [vmem:[%s426] ss:$8 sm:$0xf]
    %v428 = vld [vmem:[%s426] ss:$8 sm:$0x30]
    %v429 = vor.u32 %v427, %v428
    %v430 = vadd.f32 %v417, %v429
    %s431 = sld [smem:[#allocation3 + $0x82]]
    %s432 = sshra.s32 %s431, 3
    %s433 = sand.u32 %s431, 7
    %s434 = sshra.s32 %s431, 3
    %s435 = sand.u32 %s431, 7
    %s436 = smul.u32 %s432, 6
    %s437 = smul.u32 %s436, 8
    %s438 = sadd.s32 %s437, %s435
    %s439 = scalar_lea.vmem [#allocation5], %s438
    %v440 = vld [vmem:[%s439] ss:$8 sm:$0xf]
    %v441 = vld [vmem:[%s439] ss:$8 sm:$0x30]
    %v442 = vor.u32 %v440, %v441
    %v443 = vadd.f32 %v430, %v442
    %s444 = sld [smem:[#allocation4 + $0x82]]
    %s445 = sshra.s32 %s444, 3
    %s446 = sand.u32 %s444, 7
    %s447 = sshra.s32 %s444, 3
    %s448 = sand.u32 %s444, 7
    %s449 = smul.u32 %s445, 6
    %s450 = smul.u32 %s449, 8
    %s451 = sadd.s32 %s450, %s448
    %s452 = scalar_lea.vmem %s3, %s451
    %v453 = vld [vmem:[%s452] ss:$8 sm:$0xf]
    %v454 = vld [vmem:[%s452] ss:$8 sm:$0x30]
    %v455 = vor.u32 %v453, %v454
    %v456 = vadd.f32 %v443, %v455
    %s457 = sld [smem:[#allocation3 + $0x83]]
    %s458 = sshra.s32 %s457, 3
    %s459 = sand.u32 %s457, 7
    %s460 = sshra.s32 %s457, 3
    %s461 = sand.u32 %s457, 7
    %s462 = smul.u32 %s458, 6
    %s463 = smul.u32 %s462, 8
    %s464 = sadd.s32 %s463, %s461
    %s465 = scalar_lea.vmem [#allocation5], %s464
    %v466 = vld [vmem:[%s465] ss:$8 sm:$0xf]
    %v467 = vld [vmem:[%s465] ss:$8 sm:$0x30]
    %v468 = vor.u32 %v466, %v467
    %v469 = vadd.f32 %v456, %v468
    %s470 = sld [smem:[#allocation4 + $0x83]]
    %s471 = sshra.s32 %s470, 3
    %s472 = sand.u32 %s470, 7
    %s473 = sshra.s32 %s470, 3
    %s474 = sand.u32 %s470, 7
    %s475 = smul.u32 %s471, 6
    %s476 = smul.u32 %s475, 8
    %s477 = sadd.s32 %s476, %s474
    %s478 = scalar_lea.vmem %s3, %s477
    %v479 = vld [vmem:[%s478] ss:$8 sm:$0xf]
    %v480 = vld [vmem:[%s478] ss:$8 sm:$0x30]
    %v481 = vor.u32 %v479, %v480
    %v482 = vadd.f32 %v469, %v481
    %s483 = sld [smem:[#allocation3 + $0x84]]
    %s484 = sshra.s32 %s483, 3
    %s485 = sand.u32 %s483, 7
    %s486 = sshra.s32 %s483, 3
    %s487 = sand.u32 %s483, 7
    %s488 = smul.u32 %s484, 6
    %s489 = smul.u32 %s488, 8
    %s490 = sadd.s32 %s489, %s487
    %s491 = scalar_lea.vmem [#allocation5], %s490
    %v492 = vld [vmem:[%s491] ss:$8 sm:$0xf]
    %v493 = vld [vmem:[%s491] ss:$8 sm:$0x30]
    %v494 = vor.u32 %v492, %v493
    %v495 = vadd.f32 %v482, %v494
    %s496 = sld [smem:[#allocation4 + $0x84]]
    %s497 = sshra.s32 %s496, 3
    %s498 = sand.u32 %s496, 7
    %s499 = sshra.s32 %s496, 3
    %s500 = sand.u32 %s496, 7
    %s501 = smul.u32 %s497, 6
    %s502 = smul.u32 %s501, 8
    %s503 = sadd.s32 %s502, %s500
    %s504 = scalar_lea.vmem %s3, %s503
    %v505 = vld [vmem:[%s504] ss:$8 sm:$0xf]
    %v506 = vld [vmem:[%s504] ss:$8 sm:$0x30]
    %v507 = vor.u32 %v505, %v506
    %v508 = vadd.f32 %v495, %v507
    %s509 = sld [smem:[#allocation3 + $0x85]]
    %s510 = sshra.s32 %s509, 3
    %s511 = sand.u32 %s509, 7
    %s512 = sshra.s32 %s509, 3
    %s513 = sand.u32 %s509, 7
    %s514 = smul.u32 %s510, 6
    %s515 = smul.u32 %s514, 8
    %s516 = sadd.s32 %s515, %s513
    %s517 = scalar_lea.vmem [#allocation5], %s516
    %v518 = vld [vmem:[%s517] ss:$8 sm:$0xf]
    %v519 = vld [vmem:[%s517] ss:$8 sm:$0x30]
    %v520 = vor.u32 %v518, %v519
    %v521 = vadd.f32 %v508, %v520
    %s522 = sld [smem:[#allocation4 + $0x85]]
    %s523 = sshra.s32 %s522, 3
    %s524 = sand.u32 %s522, 7
    %s525 = sshra.s32 %s522, 3
    %s526 = sand.u32 %s522, 7
    %s527 = smul.u32 %s523, 6
    %s528 = smul.u32 %s527, 8
    %s529 = sadd.s32 %s528, %s526
    %s530 = scalar_lea.vmem %s3, %s529
    %v531 = vld [vmem:[%s530] ss:$8 sm:$0xf]
    %v532 = vld [vmem:[%s530] ss:$8 sm:$0x30]
    %v533 = vor.u32 %v531, %v532
    %v534 = vadd.f32 %v521, %v533
    %s535 = sld [smem:[#allocation3 + $0x86]]
    %s536 = sshra.s32 %s535, 3
    %s537 = sand.u32 %s535, 7
    %s538 = sshra.s32 %s535, 3
    %s539 = sand.u32 %s535, 7
    %s540 = smul.u32 %s536, 6
    %s541 = smul.u32 %s540, 8
    %s542 = sadd.s32 %s541, %s539
    %s543 = scalar_lea.vmem [#allocation5], %s542
    %v544 = vld [vmem:[%s543] ss:$8 sm:$0xf]
    %v545 = vld [vmem:[%s543] ss:$8 sm:$0x30]
    %v546 = vor.u32 %v544, %v545
    %v547 = vadd.f32 %v534, %v546
    %s548 = sld [smem:[#allocation4 + $0x86]]
    %s549 = sshra.s32 %s548, 3
    %s550 = sand.u32 %s548, 7
    %s551 = sshra.s32 %s548, 3
    %s552 = sand.u32 %s548, 7
    %s553 = smul.u32 %s549, 6
    %s554 = smul.u32 %s553, 8
    %s555 = sadd.s32 %s554, %s552
    %s556 = scalar_lea.vmem %s3, %s555
    %v557 = vld [vmem:[%s556] ss:$8 sm:$0xf]
    %v558 = vld [vmem:[%s556] ss:$8 sm:$0x30]
    %v559 = vor.u32 %v557, %v558
    %v560 = vadd.f32 %v547, %v559
    %s561 = sld [smem:[#allocation3 + $0x87]]
    %s562 = sshra.s32 %s561, 3
    %s563 = sand.u32 %s561, 7
    %s564 = sshra.s32 %s561, 3
    %s565 = sand.u32 %s561, 7
    %s566 = smul.u32 %s562, 6
    %s567 = smul.u32 %s566, 8
    %s568 = sadd.s32 %s567, %s565
    %s569 = scalar_lea.vmem [#allocation5], %s568
    %v570 = vld [vmem:[%s569] ss:$8 sm:$0xf]
    %v571 = vld [vmem:[%s569] ss:$8 sm:$0x30]
    %v572 = vor.u32 %v570, %v571
    %v573 = vadd.f32 %v560, %v572
    %s574 = sld [smem:[#allocation4 + $0x87]]
    %s575 = sshra.s32 %s574, 3
    %s576 = sand.u32 %s574, 7
    %s577 = sshra.s32 %s574, 3
    %s578 = sand.u32 %s574, 7
    %s579 = smul.u32 %s575, 6
    %s580 = smul.u32 %s579, 8
    %s581 = sadd.s32 %s580, %s578
    %s582 = scalar_lea.vmem %s3, %s581
    %v583 = vld [vmem:[%s582] ss:$8 sm:$0xf]
    %v584 = vld [vmem:[%s582] ss:$8 sm:$0x30]
    %v585 = vor.u32 %v583, %v584
    %v586 = vadd.f32 %v573, %v585
    %v587 = vmul.f32 %v586, 0.125
    %v588 = vadd.f32 %v587, %v376
    %v590 = vlaneseq
    %v591 = vshrl.u32 %v590, 7
    %v592 = vsub.s32 0, %v591
    %v593 = vrot.slane %v378, %v592
    %v594 = vlaneseq
    %v595 = vshrl.u32 %v594, 7
    %v596 = vsub.s32 1, %v595
    %v597 = vrot.slane %v378, %v596
    %v598 = vlaneseq
    %v599 = vshrl.u32 %v598, 7
    %v600 = vsub.s32 2, %v599
    %v601 = vrot.slane %v378, %v600
    %v602 = vlaneseq
    %v603 = vshrl.u32 %v602, 7
    %v604 = vsub.s32 3, %v603
    %v605 = vrot.slane %v378, %v604
    %v606 = vlaneseq
    %v607 = vshrl.u32 %v606, 7
    %v608 = vsub.s32 4, %v607
    %v609 = vrot.slane %v378, %v608
    %v610 = vlaneseq
    %v611 = vshrl.u32 %v610, 7
    %v612 = vsub.s32 5, %v611
    %v613 = vrot.slane %v378, %v612
    %v621 = vlaneseq
    %v622 = vshrl.u32 %v621, 7
    %v623 = vsub.s32 0, %v622
    %v624 = vrot.slane %v588, %v623
    %v625 = vlaneseq
    %v626 = vshrl.u32 %v625, 7
    %v627 = vsub.s32 1, %v626
    %v628 = vrot.slane %v588, %v627
    %v629 = vlaneseq
    %v630 = vshrl.u32 %v629, 7
    %v631 = vsub.s32 2, %v630
    %v632 = vrot.slane %v588, %v631
    %v633 = vlaneseq
    %v634 = vshrl.u32 %v633, 7
    %v635 = vsub.s32 3, %v634
    %v636 = vrot.slane %v588, %v635
    %v637 = vlaneseq
    %v638 = vshrl.u32 %v637, 7
    %v639 = vsub.s32 4, %v638
    %v640 = vrot.slane %v588, %v639
    %v641 = vlaneseq
    %v642 = vshrl.u32 %v641, 7
    %v643 = vsub.s32 5, %v642
    %v644 = vrot.slane %v588, %v643
    %vm651 = vcmask 1040384
    %v652 = vsel %vm651, %v593, %v624
    %v653 = vsel %vm651, %v597, %v628
    %v654 = vsel %vm651, %v601, %v632
    %v655 = vsel %vm651, %v605, %v636
    %v656 = vsel %vm651, %v609, %v640
    %v657 = vsel %vm651, %v613, %v644
    %v658 = vld [vmem:[#allocation8] sm:$0xff]
    %v659 = vld [vmem:[#allocation8 + $0x8] sm:$0xff]
    %v660 = vld [vmem:[#allocation8 + $0x10] sm:$0xff]
    %v661 = vld [vmem:[#allocation8 + $0x18] sm:$0xff]
    %v662 = vld [vmem:[#allocation8 + $0x20] sm:$0xff]
    %v663 = vld [vmem:[#allocation8 + $0x28] sm:$0xff]
    %v664 = vld [vmem:[#allocation8 + $0x30] sm:$0xff]
    %v665 = vld [vmem:[#allocation8 + $0x38] sm:$0xff]
    %v666 = vld [vmem:[#allocation8 + $0x40] sm:$0xff]
    %v667 = vld [vmem:[#allocation8 + $0x48] sm:$0xff]
    %v668 = vld [vmem:[#allocation8 + $0x50] sm:$0xff]
    %v669 = vld [vmem:[#allocation8 + $0x58] sm:$0xff]
    %v670 = vld [vmem:[#allocation8 + $0x60] sm:$0xff]
    %v671 = vld [vmem:[#allocation8 + $0x68] sm:$0xff]
    %v672 = vld [vmem:[#allocation8 + $0x70] sm:$0xff]
    %v673 = vld [vmem:[#allocation8 + $0x78] sm:$0xff]
    %v674 = vld [vmem:[#allocation8 + $0x80] sm:$0xff]
    %v675 = vld [vmem:[#allocation8 + $0x88] sm:$0xff]
    %v676 = vld [vmem:[#allocation8 + $0x90] sm:$0xff]
    %v677 = vld [vmem:[#allocation8 + $0x98] sm:$0xff]
    %v678 = vld [vmem:[#allocation8 + $0xa0] sm:$0xff]
    %v679 = vld [vmem:[#allocation8 + $0xa8] sm:$0xff]
    %v680 = vld [vmem:[#allocation8 + $0xb0] sm:$0xff]
    %v681 = vld [vmem:[#allocation8 + $0xb8] sm:$0xff]
    %v682 = vld [vmem:[#allocation8 + $0xc0] sm:$0xff]
    %v683 = vld [vmem:[#allocation8 + $0xc8] sm:$0xff]
    %v684 = vld [vmem:[#allocation8 + $0xd0] sm:$0xff]
    %v685 = vld [vmem:[#allocation8 + $0xd8] sm:$0xff]
    %v686 = vld [vmem:[#allocation8 + $0xe0] sm:$0xff]
    %v687 = vld [vmem:[#allocation8 + $0xe8] sm:$0xff]
    %v688 = vld [vmem:[#allocation8 + $0xf0] sm:$0xff]
    %v689 = vld [vmem:[#allocation8 + $0xf8] sm:$0xff]
    %v690 = vld [vmem:[#allocation8 + $0x100] sm:$0xff]
    %v691 = vld [vmem:[#allocation8 + $0x108] sm:$0xff]
    %v692 = vld [vmem:[#allocation8 + $0x110] sm:$0xff]
    %v693 = vld [vmem:[#allocation8 + $0x118] sm:$0xff]
    %v694 = vld [vmem:[#allocation8 + $0x120] sm:$0xff]
    %v695 = vld [vmem:[#allocation8 + $0x128] sm:$0xff]
    %v696 = vld [vmem:[#allocation8 + $0x130] sm:$0xff]
    %v697 = vld [vmem:[#allocation8 + $0x138] sm:$0xff]
    %v698 = vld [vmem:[#allocation8 + $0x140] sm:$0xff]
    %v699 = vld [vmem:[#allocation8 + $0x148] sm:$0xff]
    %v700 = vld [vmem:[#allocation8 + $0x150] sm:$0xff]
    %v701 = vld [vmem:[#allocation8 + $0x158] sm:$0xff]
    %v702 = vld [vmem:[#allocation8 + $0x160] sm:$0xff]
    %v703 = vld [vmem:[#allocation8 + $0x168] sm:$0xff]
    %v704 = vld [vmem:[#allocation8 + $0x170] sm:$0xff]
    %v705 = vld [vmem:[#allocation8 + $0x178] sm:$0xff]
    %v706 = vld [vmem:[#allocation8 + $0x180] sm:$0xff]
    %v707 = vld [vmem:[#allocation8 + $0x188] sm:$0xff]
    %v708 = vld [vmem:[#allocation8 + $0x190] sm:$0xff]
    %v709 = vld [vmem:[#allocation8 + $0x198] sm:$0xff]
    %v710 = vld [vmem:[#allocation8 + $0x1a0] sm:$0xff]
    %v711 = vld [vmem:[#allocation8 + $0x1a8] sm:$0xff]
    %v712 = vld [vmem:[#allocation8 + $0x1b0] sm:$0xff]
    %v713 = vld [vmem:[#allocation8 + $0x1b8] sm:$0xff]
    %v714 = vld [vmem:[#allocation8 + $0x1c0] sm:$0xff]
    %v715 = vld [vmem:[#allocation8 + $0x1c8] sm:$0xff]
    %v716 = vld [vmem:[#allocation8 + $0x1d0] sm:$0xff]
    %v717 = vld [vmem:[#allocation8 + $0x1d8] sm:$0xff]
    %v718 = vld [vmem:[#allocation8 + $0x1e0] sm:$0xff]
    %v719 = vld [vmem:[#allocation8 + $0x1e8] sm:$0xff]
    %v720 = vld [vmem:[#allocation8 + $0x1f0] sm:$0xff]
    %v721 = vld [vmem:[#allocation8 + $0x1f8] sm:$0xff]
    %v722 = vld [vmem:[#allocation8 + $0x200] sm:$0xff]
    %v723 = vld [vmem:[#allocation8 + $0x208] sm:$0xff]
    %v724 = vld [vmem:[#allocation8 + $0x210] sm:$0xff]
    %v725 = vld [vmem:[#allocation8 + $0x218] sm:$0xff]
    %v726 = vld [vmem:[#allocation8 + $0x220] sm:$0xff]
    %v727 = vld [vmem:[#allocation8 + $0x228] sm:$0xff]
    %v728 = vld [vmem:[#allocation8 + $0x230] sm:$0xff]
    %v729 = vld [vmem:[#allocation8 + $0x238] sm:$0xff]
    %v730 = vld [vmem:[#allocation8 + $0x240] sm:$0xff]
    %v731 = vld [vmem:[#allocation8 + $0x248] sm:$0xff]
    %v732 = vld [vmem:[#allocation8 + $0x250] sm:$0xff]
    %v733 = vld [vmem:[#allocation8 + $0x258] sm:$0xff]
    %v734 = vld [vmem:[#allocation8 + $0x260] sm:$0xff]
    %v735 = vld [vmem:[#allocation8 + $0x268] sm:$0xff]
    %v736 = vld [vmem:[#allocation8 + $0x270] sm:$0xff]
    %v737 = vld [vmem:[#allocation8 + $0x278] sm:$0xff]
    %v738 = vld [vmem:[#allocation8 + $0x280] sm:$0xff]
    %v739 = vld [vmem:[#allocation8 + $0x288] sm:$0xff]
    %v740 = vld [vmem:[#allocation8 + $0x290] sm:$0xff]
    %v741 = vld [vmem:[#allocation8 + $0x298] sm:$0xff]
    %v742 = vld [vmem:[#allocation8 + $0x2a0] sm:$0xff]
    %v743 = vld [vmem:[#allocation8 + $0x2a8] sm:$0xff]
    %v744 = vld [vmem:[#allocation8 + $0x2b0] sm:$0xff]
    %v745 = vld [vmem:[#allocation8 + $0x2b8] sm:$0xff]
    %v746 = vld [vmem:[#allocation8 + $0x2c0] sm:$0xff]
    %v747 = vld [vmem:[#allocation8 + $0x2c8] sm:$0xff]
    %v748 = vld [vmem:[#allocation8 + $0x2d0] sm:$0xff]
    %v749 = vld [vmem:[#allocation8 + $0x2d8] sm:$0xff]
    %v750 = vld [vmem:[#allocation8 + $0x2e0] sm:$0xff]
    %v751 = vld [vmem:[#allocation8 + $0x2e8] sm:$0xff]
    %v752 = vld [vmem:[#allocation8 + $0x2f0] sm:$0xff]
    %v753 = vld [vmem:[#allocation8 + $0x2f8] sm:$0xff]
    %v754 = vld [vmem:[%s6] sm:$0x1]
    %v756 = vlaneseq
    %v757 = vshrl.u32 %v756, 7
    %v758 = vsub.s32 0, %v757
    %v759 = vrot.slane %v754, %v758
    %761 = vmatprep.subr.mxu0 0.0
    %762 = vmatpush1.msra.mxu0 %v658
    %763 = vmatprep.subr.mxu0 0.0
    %764 = vmatpush1.msra.mxu0 %v659
    %765 = vmatprep.subr.mxu0 0.0
    %766 = vmatpush1.msra.mxu0 %v660
    %767 = vmatprep.subr.mxu0 0.0
    %768 = vmatpush1.msra.mxu0 %v661
    %769 = vmatprep.subr.mxu0 0.0
    %770 = vmatpush1.msra.mxu0 %v662
    %771 = vmatprep.subr.mxu0 0.0
    %772 = vmatpush1.msra.mxu0 %v663
    %773 = vmatprep.subr.mxu0 0.0
    %774 = vmatpush1.msra.mxu0 %v664
    %775 = vmatprep.subr.mxu0 0.0
    %776 = vmatpush1.msra.mxu0 %v665
    %777 = vmatprep.subr.mxu0 0.0
    %778 = vmatpush1.msra.mxu0 %v666
    %779 = vmatprep.subr.mxu0 0.0
    %780 = vmatpush1.msra.mxu0 %v667
    %781 = vmatprep.subr.mxu0 0.0
    %782 = vmatpush1.msra.mxu0 %v668
    %783 = vmatprep.subr.mxu0 0.0
    %784 = vmatpush1.msra.mxu0 %v669
    %785 = vmatprep.subr.mxu0 0.0
    %786 = vmatpush1.msra.mxu0 %v670
    %787 = vmatprep.subr.mxu0 0.0
    %788 = vmatpush1.msra.mxu0 %v671
    %789 = vmatprep.subr.mxu0 0.0
    %790 = vmatpush1.msra.mxu0 %v672
    %791 = vmatprep.subr.mxu0 0.0
    %792 = vmatpush1.msra.mxu0 %v673
    %793 = vmatprep.subr.mxu0 0.0
    %794 = vmatpush1.msra.mxu0 %v674
    %795 = vmatprep.subr.mxu0 0.0
    %796 = vmatpush1.msra.mxu0 %v675
    %797 = vmatprep.subr.mxu0 0.0
    %798 = vmatpush1.msra.mxu0 %v676
    %799 = vmatprep.subr.mxu0 0.0
    %800 = vmatpush1.msra.mxu0 %v677
    %801 = vmatprep.subr.mxu0 0.0
    %802 = vmatpush1.msra.mxu0 %v678
    %803 = vmatprep.subr.mxu0 0.0
    %804 = vmatpush1.msra.mxu0 %v679
    %805 = vmatprep.subr.mxu0 0.0
    %806 = vmatpush1.msra.mxu0 %v680
    %807 = vmatprep.subr.mxu0 0.0
    %808 = vmatpush1.msra.mxu0 %v681
    %809 = vmatprep.subr.mxu0 0.0
    %810 = vmatpush1.msra.mxu0 %v682
    %811 = vmatprep.subr.mxu0 0.0
    %812 = vmatpush1.msra.mxu0 %v683
    %813 = vmatprep.subr.mxu0 0.0
    %814 = vmatpush1.msra.mxu0 %v684
    %815 = vmatprep.subr.mxu0 0.0
    %816 = vmatpush1.msra.mxu0 %v685
    %817 = vmatprep.subr.mxu0 0.0
    %818 = vmatpush1.msra.mxu0 %v686
    %819 = vmatprep.subr.mxu0 0.0
    %820 = vmatpush1.msra.mxu0 %v687
    %821 = vmatprep.subr.mxu0 0.0
    %822 = vmatpush1.msra.mxu0 %v688
    %823 = vmatprep.subr.mxu0 0.0
    %824 = vmatpush1.msra.mxu0 %v689
    %825 = vmatprep.mubr.f32.mxu0 %v653
    %826 = vmatmul.mubr.f32.gmra.mrb[0].mxu0 %v652
    %v827 = vpop.f32.mrb[0].mxu0
    %v828 = vadd.f32 %v759, %v827
    %v829 = vpop.f32.mrb[0].mxu0
    %830 = vdwg.mxu0
    %831 = vmatprep.subr.mxu0 0.0
    %832 = vmatpush1.msra.mxu0 %v690
    %833 = vmatprep.subr.mxu0 0.0
    %834 = vmatpush1.msra.mxu0 %v691
    %835 = vmatprep.subr.mxu0 0.0
    %836 = vmatpush1.msra.mxu0 %v692
    %837 = vmatprep.subr.mxu0 0.0
    %838 = vmatpush1.msra.mxu0 %v693
    %839 = vmatprep.subr.mxu0 0.0
    %840 = vmatpush1.msra.mxu0 %v694
    %841 = vmatprep.subr.mxu0 0.0
    %842 = vmatpush1.msra.mxu0 %v695
    %843 = vmatprep.subr.mxu0 0.0
    %844 = vmatpush1.msra.mxu0 %v696
    %845 = vmatprep.subr.mxu0 0.0
    %846 = vmatpush1.msra.mxu0 %v697
    %847 = vmatprep.subr.mxu0 0.0
    %848 = vmatpush1.msra.mxu0 %v698
    %849 = vmatprep.subr.mxu0 0.0
    %850 = vmatpush1.msra.mxu0 %v699
    %851 = vmatprep.subr.mxu0 0.0
    %852 = vmatpush1.msra.mxu0 %v700
    %853 = vmatprep.subr.mxu0 0.0
    %854 = vmatpush1.msra.mxu0 %v701
    %855 = vmatprep.subr.mxu0 0.0
    %856 = vmatpush1.msra.mxu0 %v702
    %857 = vmatprep.subr.mxu0 0.0
    %858 = vmatpush1.msra.mxu0 %v703
    %859 = vmatprep.subr.mxu0 0.0
    %860 = vmatpush1.msra.mxu0 %v704
    %861 = vmatprep.subr.mxu0 0.0
    %862 = vmatpush1.msra.mxu0 %v705
    %863 = vmatprep.subr.mxu0 0.0
    %864 = vmatpush1.msra.mxu0 %v706
    %865 = vmatprep.subr.mxu0 0.0
    %866 = vmatpush1.msra.mxu0 %v707
    %867 = vmatprep.subr.mxu0 0.0
    %868 = vmatpush1.msra.mxu0 %v708
    %869 = vmatprep.subr.mxu0 0.0
    %870 = vmatpush1.msra.mxu0 %v709
    %871 = vmatprep.subr.mxu0 0.0
    %872 = vmatpush1.msra.mxu0 %v710
    %873 = vmatprep.subr.mxu0 0.0
    %874 = vmatpush1.msra.mxu0 %v711
    %875 = vmatprep.subr.mxu0 0.0
    %876 = vmatpush1.msra.mxu0 %v712
    %877 = vmatprep.subr.mxu0 0.0
    %878 = vmatpush1.msra.mxu0 %v713
    %879 = vmatprep.subr.mxu0 0.0
    %880 = vmatpush1.msra.mxu0 %v714
    %881 = vmatprep.subr.mxu0 0.0
    %882 = vmatpush1.msra.mxu0 %v715
    %883 = vmatprep.subr.mxu0 0.0
    %884 = vmatpush1.msra.mxu0 %v716
    %885 = vmatprep.subr.mxu0 0.0
    %886 = vmatpush1.msra.mxu0 %v717
    %887 = vmatprep.subr.mxu0 0.0
    %888 = vmatpush1.msra.mxu0 %v718
    %889 = vmatprep.subr.mxu0 0.0
    %890 = vmatpush1.msra.mxu0 %v719
    %891 = vmatprep.subr.mxu0 0.0
    %892 = vmatpush1.msra.mxu0 %v720
    %893 = vmatprep.subr.mxu0 0.0
    %894 = vmatpush1.msra.mxu0 %v721
    %895 = vmatprep.mubr.f32.mxu0 %v655
    %896 = vmatmul.mubr.f32.gmra.mrb[0].mxu0 %v654
    %v897 = vpop.f32.mrb[0].mxu0
    %v898 = vadd.f32 %v828, %v897
    %v899 = vpop.f32.mrb[0].mxu0
    %900 = vdwg.mxu0
    %901 = vmatprep.subr.mxu0 0.0
    %902 = vmatpush1.msra.mxu0 %v722
    %903 = vmatprep.subr.mxu0 0.0
    %904 = vmatpush1.msra.mxu0 %v723
    %905 = vmatprep.subr.mxu0 0.0
    %906 = vmatpush1.msra.mxu0 %v724
    %907 = vmatprep.subr.mxu0 0.0
    %908 = vmatpush1.msra.mxu0 %v725
    %909 = vmatprep.subr.mxu0 0.0
    %910 = vmatpush1.msra.mxu0 %v726
    %911 = vmatprep.subr.mxu0 0.0
    %912 = vmatpush1.msra.mxu0 %v727
    %913 = vmatprep.subr.mxu0 0.0
    %914 = vmatpush1.msra.mxu0 %v728
    %915 = vmatprep.subr.mxu0 0.0
    %916 = vmatpush1.msra.mxu0 %v729
    %917 = vmatprep.subr.mxu0 0.0
    %918 = vmatpush1.msra.mxu0 %v730
    %919 = vmatprep.subr.mxu0 0.0
    %920 = vmatpush1.msra.mxu0 %v731
    %921 = vmatprep.subr.mxu0 0.0
    %922 = vmatpush1.msra.mxu0 %v732
    %923 = vmatprep.subr.mxu0 0.0
    %924 = vmatpush1.msra.mxu0 %v733
    %925 = vmatprep.subr.mxu0 0.0
    %926 = vmatpush1.msra.mxu0 %v734
    %927 = vmatprep.subr.mxu0 0.0
    %928 = vmatpush1.msra.mxu0 %v735
    %929 = vmatprep.subr.mxu0 0.0
    %930 = vmatpush1.msra.mxu0 %v736
    %931 = vmatprep.subr.mxu0 0.0
    %932 = vmatpush1.msra.mxu0 %v737
    %933 = vmatprep.subr.mxu0 0.0
    %934 = vmatpush1.msra.mxu0 %v738
    %935 = vmatprep.subr.mxu0 0.0
    %936 = vmatpush1.msra.mxu0 %v739
    %937 = vmatprep.subr.mxu0 0.0
    %938 = vmatpush1.msra.mxu0 %v740
    %939 = vmatprep.subr.mxu0 0.0
    %940 = vmatpush1.msra.mxu0 %v741
    %941 = vmatprep.subr.mxu0 0.0
    %942 = vmatpush1.msra.mxu0 %v742
    %943 = vmatprep.subr.mxu0 0.0
    %944 = vmatpush1.msra.mxu0 %v743
    %945 = vmatprep.subr.mxu0 0.0
    %946 = vmatpush1.msra.mxu0 %v744
    %947 = vmatprep.subr.mxu0 0.0
    %948 = vmatpush1.msra.mxu0 %v745
    %949 = vmatprep.subr.mxu0 0.0
    %950 = vmatpush1.msra.mxu0 %v746
    %951 = vmatprep.subr.mxu0 0.0
    %952 = vmatpush1.msra.mxu0 %v747
    %953 = vmatprep.subr.mxu0 0.0
    %954 = vmatpush1.msra.mxu0 %v748
    %955 = vmatprep.subr.mxu0 0.0
    %956 = vmatpush1.msra.mxu0 %v749
    %957 = vmatprep.subr.mxu0 0.0
    %958 = vmatpush1.msra.mxu0 %v750
    %959 = vmatprep.subr.mxu0 0.0
    %960 = vmatpush1.msra.mxu0 %v751
    %961 = vmatprep.subr.mxu0 0.0
    %962 = vmatpush1.msra.mxu0 %v752
    %963 = vmatprep.subr.mxu0 0.0
    %964 = vmatpush1.msra.mxu0 %v753
    %965 = vmatprep.mubr.f32.mxu0 %v657
    %966 = vmatmul.mubr.f32.gmra.mrb[0].mxu0 %v656
    %v967 = vpop.f32.mrb[0].mxu0
    %v968 = vadd.f32 %v898, %v967
    %v969 = vpop.f32.mrb[0].mxu0
    %970 = vdwg.mxu0
    %v971 = vmax.f32 %v968, 0.0
    %v972 = vld [vmem:[%s7] sm:$0xff]
    %v973 = vld [vmem:[%s7 + $0x8] sm:$0xff]
    %v974 = vld [vmem:[%s7 + $0x10] sm:$0xff]
    %v975 = vld [vmem:[%s7 + $0x18] sm:$0xff]
    %v976 = vld [vmem:[%s7 + $0x20] sm:$0xff]
    %v977 = vld [vmem:[%s7 + $0x28] sm:$0xff]
    %v978 = vld [vmem:[%s7 + $0x30] sm:$0xff]
    %v979 = vld [vmem:[%s7 + $0x38] sm:$0xff]
    %v980 = vld [vmem:[%s7 + $0x40] sm:$0xff]
    %v981 = vld [vmem:[%s7 + $0x48] sm:$0xff]
    %v982 = vld [vmem:[%s7 + $0x50] sm:$0xff]
    %v983 = vld [vmem:[%s7 + $0x58] sm:$0xff]
    %v984 = vld [vmem:[%s7 + $0x60] sm:$0xff]
    %v985 = vld [vmem:[%s7 + $0x68] sm:$0xff]
    %v986 = vld [vmem:[%s7 + $0x70] sm:$0xff]
    %v987 = vld [vmem:[%s7 + $0x78] sm:$0xff]
    %v988 = vld [vmem:[%s8] sm:$0x1]
    %v990 = vlaneseq
    %v991 = vshrl.u32 %v990, 7
    %v992 = vsub.s32 0, %v991
    %v993 = vrot.slane %v988, %v992
    %995 = vmatprep.subr.mxu0 0.0
    %996 = vmatpush1.msra.mxu0 %v972
    %997 = vmatprep.subr.mxu0 0.0
    %998 = vmatpush1.msra.mxu0 %v973
    %999 = vmatprep.subr.mxu0 0.0
    %1000 = vmatpush1.msra.mxu0 %v974
    %1001 = vmatprep.subr.mxu0 0.0
    %1002 = vmatpush1.msra.mxu0 %v975
    %1003 = vmatprep.subr.mxu0 0.0
    %1004 = vmatpush1.msra.mxu0 %v976
    %1005 = vmatprep.subr.mxu0 0.0
    %1006 = vmatpush1.msra.mxu0 %v977
    %1007 = vmatprep.subr.mxu0 0.0
    %1008 = vmatpush1.msra.mxu0 %v978
    %1009 = vmatprep.subr.mxu0 0.0
    %1010 = vmatpush1.msra.mxu0 %v979
    %1011 = vmatprep.subr.mxu0 0.0
    %1012 = vmatpush1.msra.mxu0 %v980
    %1013 = vmatprep.subr.mxu0 0.0
    %1014 = vmatpush1.msra.mxu0 %v981
    %1015 = vmatprep.subr.mxu0 0.0
    %1016 = vmatpush1.msra.mxu0 %v982
    %1017 = vmatprep.subr.mxu0 0.0
    %1018 = vmatpush1.msra.mxu0 %v983
    %1019 = vmatprep.subr.mxu0 0.0
    %1020 = vmatpush1.msra.mxu0 %v984
    %1021 = vmatprep.subr.mxu0 0.0
    %1022 = vmatpush1.msra.mxu0 %v985
    %1023 = vmatprep.subr.mxu0 0.0
    %1024 = vmatpush1.msra.mxu0 %v986
    %1025 = vmatprep.subr.mxu0 0.0
    %1026 = vmatpush1.msra.mxu0 %v987
    %1027 = vmatprep.subr.mxu0 0.0
    %1028 = vmatpush1.msra.mxu0 0.0
    %1029 = vmatprep.subr.mxu0 0.0
    %1030 = vmatpush1.msra.mxu0 0.0
    %1031 = vmatprep.subr.mxu0 0.0
    %1032 = vmatpush1.msra.mxu0 0.0
    %1033 = vmatprep.subr.mxu0 0.0
    %1034 = vmatpush1.msra.mxu0 0.0
    %1035 = vmatprep.subr.mxu0 0.0
    %1036 = vmatpush1.msra.mxu0 0.0
    %1037 = vmatprep.subr.mxu0 0.0
    %1038 = vmatpush1.msra.mxu0 0.0
    %1039 = vmatprep.subr.mxu0 0.0
    %1040 = vmatpush1.msra.mxu0 0.0
    %1041 = vmatprep.subr.mxu0 0.0
    %1042 = vmatpush1.msra.mxu0 0.0
    %1043 = vmatprep.subr.mxu0 0.0
    %1044 = vmatpush1.msra.mxu0 0.0
    %1045 = vmatprep.subr.mxu0 0.0
    %1046 = vmatpush1.msra.mxu0 0.0
    %1047 = vmatprep.subr.mxu0 0.0
    %1048 = vmatpush1.msra.mxu0 0.0
    %1049 = vmatprep.subr.mxu0 0.0
    %1050 = vmatpush1.msra.mxu0 0.0
    %1051 = vmatprep.subr.mxu0 0.0
    %1052 = vmatpush1.msra.mxu0 0.0
    %1053 = vmatprep.subr.mxu0 0.0
    %1054 = vmatpush1.msra.mxu0 0.0
    %1055 = vmatprep.subr.mxu0 0.0
    %1056 = vmatpush1.msra.mxu0 0.0
    %1057 = vmatprep.subr.mxu0 0.0
    %1058 = vmatpush1.msra.mxu0 0.0
    %1059 = vmatprep.mubr.f32.mxu0 0.0
    %1060 = vmatmul.mubr.f32.gmra.mrb[0].mxu0 %v971
    %v1061 = vpop.f32.mrb[0].mxu0
    %v1062 = vadd.f32 %v993, %v1061
    %v1063 = vpop.f32.mrb[0].mxu0
    %1064 = vdwg.mxu0
    %v1065 = vmax.f32 %v1062, 0.0
    %v1066 = vld [vmem:[%s9] sm:$0xff]
    %v1067 = vld [vmem:[%s9 + $0x8] sm:$0xff]
    %v1068 = vld [vmem:[%s9 + $0x10] sm:$0xff]
    %v1069 = vld [vmem:[%s9 + $0x18] sm:$0xff]
    %v1070 = vld [vmem:[%s9 + $0x20] sm:$0xff]
    %v1071 = vld [vmem:[%s9 + $0x28] sm:$0xff]
    %v1072 = vld [vmem:[%s9 + $0x30] sm:$0xff]
    %v1073 = vld [vmem:[%s9 + $0x38] sm:$0xff]
    %v1074 = vld [vmem:[%s10] sm:$0x1]
    %v1076 = vlaneseq
    %v1077 = vshrl.u32 %v1076, 7
    %v1078 = vsub.s32 0, %v1077
    %v1079 = vrot.slane %v1074, %v1078
    %vm1081 = vcmask 523264
    %v1083 = vsel %vm1081, %v1065, 0
    %1085 = vmatprep.subr.mxu0 0.0
    %1086 = vmatpush1.msra.mxu0 %v1066
    %1087 = vmatprep.subr.mxu0 0.0
    %1088 = vmatpush1.msra.mxu0 %v1067
    %1089 = vmatprep.subr.mxu0 0.0
    %1090 = vmatpush1.msra.mxu0 %v1068
    %1091 = vmatprep.subr.mxu0 0.0
    %1092 = vmatpush1.msra.mxu0 %v1069
    %1093 = vmatprep.subr.mxu0 0.0
    %1094 = vmatpush1.msra.mxu0 %v1070
    %1095 = vmatprep.subr.mxu0 0.0
    %1096 = vmatpush1.msra.mxu0 %v1071
    %1097 = vmatprep.subr.mxu0 0.0
    %1098 = vmatpush1.msra.mxu0 %v1072
    %1099 = vmatprep.subr.mxu0 0.0
    %1100 = vmatpush1.msra.mxu0 %v1073
    %1101 = vmatprep.subr.mxu0 0.0
    %1102 = vmatpush1.msra.mxu0 0.0
    %1103 = vmatprep.subr.mxu0 0.0
    %1104 = vmatpush1.msra.mxu0 0.0
    %1105 = vmatprep.subr.mxu0 0.0
    %1106 = vmatpush1.msra.mxu0 0.0
    %1107 = vmatprep.subr.mxu0 0.0
    %1108 = vmatpush1.msra.mxu0 0.0
    %1109 = vmatprep.subr.mxu0 0.0
    %1110 = vmatpush1.msra.mxu0 0.0
    %1111 = vmatprep.subr.mxu0 0.0
    %1112 = vmatpush1.msra.mxu0 0.0
    %1113 = vmatprep.subr.mxu0 0.0
    %1114 = vmatpush1.msra.mxu0 0.0
    %1115 = vmatprep.subr.mxu0 0.0
    %1116 = vmatpush1.msra.mxu0 0.0
    %1117 = vmatprep.subr.mxu0 0.0
    %1118 = vmatpush1.msra.mxu0 0.0
    %1119 = vmatprep.subr.mxu0 0.0
    %1120 = vmatpush1.msra.mxu0 0.0
    %1121 = vmatprep.subr.mxu0 0.0
    %1122 = vmatpush1.msra.mxu0 0.0
    %1123 = vmatprep.subr.mxu0 0.0
    %1124 = vmatpush1.msra.mxu0 0.0
    %1125 = vmatprep.subr.mxu0 0.0
    %1126 = vmatpush1.msra.mxu0 0.0
    %1127 = vmatprep.subr.mxu0 0.0
    %1128 = vmatpush1.msra.mxu0 0.0
    %1129 = vmatprep.subr.mxu0 0.0
    %1130 = vmatpush1.msra.mxu0 0.0
    %1131 = vmatprep.subr.mxu0 0.0
    %1132 = vmatpush1.msra.mxu0 0.0
    %1133 = vmatprep.subr.mxu0 0.0
    %1134 = vmatpush1.msra.mxu0 0.0
    %1135 = vmatprep.subr.mxu0 0.0
    %1136 = vmatpush1.msra.mxu0 0.0
    %1137 = vmatprep.subr.mxu0 0.0
    %1138 = vmatpush1.msra.mxu0 0.0
    %1139 = vmatprep.subr.mxu0 0.0
    %1140 = vmatpush1.msra.mxu0 0.0
    %1141 = vmatprep.subr.mxu0 0.0
    %1142 = vmatpush1.msra.mxu0 0.0
    %1143 = vmatprep.subr.mxu0 0.0
    %1144 = vmatpush1.msra.mxu0 0.0
    %1145 = vmatprep.subr.mxu0 0.0
    %1146 = vmatpush1.msra.mxu0 0.0
    %1147 = vmatprep.subr.mxu0 0.0
    %1148 = vmatpush1.msra.mxu0 0.0
    %1149 = vmatprep.mubr.f32.mxu0 0.0
    %1150 = vmatmul.mubr.f32.gmra.mrb[0].mxu0 %v1083
    %v1151 = vpop.f32.mrb[0].mxu0
    %v1152 = vadd.f32 %v1079, %v1151
    %v1153 = vpop.f32.mrb[0].mxu0
    %1154 = vdwg.mxu0
    %v1155 = vxor.u32 %v1152, 2147483648
    %v1156 = vmul.f32 %v1155, 1.442695
    %v1157 = vpow.pop %v1156
    %v1158 = vadd.f32 %v1157, 1.0
    %v1159 = vrcp.pop %v1158
    %v1160 = vmul.f32 1.0, %v1159
    %1161 = vst [vmem:[#allocation10] sm:$0x3] %v1160
    // Predicated region
    $region46: #{quering_model_forward.1} parent=1 // pred_check
      _
    $region47: #{quering_model_forward.1} parent=1 // pred_check_branch
      %1163 = sbr.rel (0) target = $region49
    $region48: #{quering_model_forward.1} parent=1 // pred_region
      %s1165 = ssub.s32 32, 32
      %1166 = vsyncadd [#allocation7], %s1165
      %s1168 = sshll.u32 [#allocation10], 4
      %s1169 = int_to_ptr.vmem [resolvable:$true] %s1168
      %1171 = dma.vmem_to_hbm [thread:$0]  %s1169, 32, %s11, [#allocation7]
    $region49: #{quering_model_forward.1} parent=1 // pred_fallthru
      _
    // Predicated region
    $region50: #{quering_model_forward.1} parent=1 // pred_check
      _
    $region51: #{quering_model_forward.1} parent=1 // pred_check_branch
      %1173 = sbr.rel (0) target = $region53
    $region52: #{quering_model_forward.1} parent=1 // pred_region
      %1174 = dma.done [#allocation7], 32
    $region53: #{quering_model_forward.1} parent=1 // pred_fallthru
      _
    %1175 = vsyncpa [#allocation6], 1
    %1176 = vsyncpa [#allocation9], 1
    %1177 = vsyncpa [#allocation7], 1

</llo_original>
